<compile_context>
chip_gen: v7x
topology: tpu7x:2x2x1
jax: 0.10.0
libtpu: 0.0.40
codegen_flags: <defaults>
</compile_context>

<pallas_src>
import math

import jax
import jax.numpy as jnp
import numpy as np
from jax.experimental import pallas as pl
from jax.experimental.pallas import tpu as pltpu


def _make_fp_nn_kernel(num_heads, num_layers, seq_len, d_bert, d_mem, d_k,
                       batch_block, fuse_qk):
    """Fused attention-adjacency + GCN kernel for one batch block."""
    inv_sqrt_dk = 1.0 / math.sqrt(d_k)
    heads_f = float(num_heads)
    bb, S, D, H = batch_block, seq_len, d_bert, num_heads
    n_proj = 2 if fuse_qk else 4

    def kernel(x_ref, mkey_ref, mrow_ref, hmask_ref, eye_ref, *rest):
        gcn_refs = rest[n_proj:n_proj + 2 * num_layers]
        out_ref = rest[n_proj + 2 * num_layers]
        adj_ref = rest[n_proj + 2 * num_layers + 1]

        x = x_ref[...]                                    # (bb, S, D) f32
        x_bf = x.reshape(bb * S, D).astype(jnp.bfloat16)  # batch folded into M
        mkey = mkey_ref[...]                              # (bb, 1, S)
        mrow = mrow_ref[...]                              # (bb, S, 1)
        hmask = hmask_ref[...]                            # (H, D)  0/1 f32
        eye = eye_ref[...]                                # (S, S)  f32

        # ---- Q / K projections: one (bb*S, D) matmul each (bf16 MXU) ----
        if fuse_qk:
            wqk_ref, bqk_ref = rest[0], rest[1]
            qk = jnp.dot(x_bf, wqk_ref[...],
                         preferred_element_type=jnp.float32) + bqk_ref[...]
            q = qk[:, :D]            # lane-aligned split (only when D % 128 == 0)
            k = qk[:, D:]
        else:
            wq_ref, bq_ref, wk_ref, bk_ref = rest[:4]
            q = jnp.dot(x_bf, wq_ref[...],
                        preferred_element_type=jnp.float32) + bq_ref[...]
            k = jnp.dot(x_bf, wk_ref[...],
                        preferred_element_type=jnp.float32) + bk_ref[...]
        q3 = q.reshape(bb, S, D)
        k_bf = k.reshape(bb, S, D).astype(jnp.bfloat16)

        # ---- all heads in ONE matmul: head-masked Q stacked to M = H*S ----
        qh = jnp.concatenate(
            [q3 * hmask[h:h + 1][None, :, :] for h in range(H)], axis=1
        ).astype(jnp.bfloat16)                            # (bb, H*S, D)
        sc = jnp.einsum("bmd,bkd->bmk", qh, k_bf,
                        preferred_element_type=jnp.float32) * inv_sqrt_dk
        sc = jnp.where(mkey == 0.0, -1e9, sc)             # masked_fill(mask==0)
        sc = sc - jnp.max(sc, axis=-1, keepdims=True)
        p = jnp.exp(sc)
        # fold the 1/num_heads head-average into the softmax normalizer
        p = p * pl.reciprocal(jnp.sum(p, axis=-1, keepdims=True) * heads_f,
                              approx=False)

        # head average: sum the H row-blocks of the (bb, H*S, S) tensor
        adj = p[:, 0:S, :]
        for h in range(1, H):
            adj = adj + p[:, h * S:(h + 1) * S, :]        # (bb, S, S)

        # ---- zero diagonal, add identity; row masking ----
        adj = adj * (1.0 - eye)[None, :, :] + eye[None, :, :]
        adj = mrow * adj

        # ---- denominator: approximate (EUP) reciprocal, feeds bf16 GCN ----
        inv_denom = pl.reciprocal(
            jnp.sum(adj, axis=-1, keepdims=True) + 1.0, approx=True)
        inv_denom_flat = inv_denom.reshape(bb * S, 1)

        # ---- GCN layers (bf16 MXU operands, f32 accumulate) ----
        adj_bf = adj.astype(jnp.bfloat16)
        h3 = x
        h_flat = None
        for l in range(num_layers):
            din = D if l == 0 else d_mem
            ax = jnp.einsum("bqk,bkd->bqd", adj_bf, h3.astype(jnp.bfloat16),
                            preferred_element_type=jnp.float32)      # (bb,S,din)
            axw = jnp.dot(ax.reshape(bb * S, din).astype(jnp.bfloat16),
                          gcn_refs[2 * l][...],
                          preferred_element_type=jnp.float32) + gcn_refs[2 * l + 1][...]
            h_flat = jnp.maximum(axw * inv_denom_flat, 0.0)  # ReLU; dropout = id
            h3 = h_flat.reshape(bb, S, d_mem)

        out_ref[...] = h_flat.astype(out_ref.dtype)                  # (bb*S, Dmem)
        adj_ref[...] = adj.reshape(bb * S, S).astype(adj_ref.dtype)  # (bb*S, S)

    return kernel


def _pick_num_batch_blocks(batch, seq_len, d_bert, d_mem):
    """>=2 grid steps for DMA/compute overlap (and v7x megacore sharding),
    keeping >=1 batch element per step, flattened rows sublane-aligned, and
    capping the step count once per-step blocks drop below ~0.5 MiB."""
    per_b_bytes = 4 * (seq_len * seq_len + seq_len * (d_bert + d_mem))
    best = 1
    for nb in range(1, batch + 1):
        if batch % nb:
            continue
        bb = batch // nb
        if nb > 1 and (bb * seq_len) % 8 != 0:
            continue
        if nb <= 8 or bb * per_b_bytes >= (512 << 10):
            best = nb
    return best


def fp_nn_forward(att_inputs, src_mask, params, *, num_heads, num_layers,
                  num_batch_blocks=None, out_dtype=jnp.float32,
                  adj_dtype=jnp.float32):
    """att_inputs: [B,S,bert_dim] f32, src_mask: [B,1,S] 0/1 floats.

    Returns (fp_outputs [B,S,mem_dim], fp_adj [B,S,S]).
    On v5e pass adj_dtype=jnp.bfloat16 to halve the dominant adj writeback.
    """
    B, S, Dbert = att_inputs.shape
    Dmem = params["gcn"][0][0].shape[1]
    d_k = Dbert // num_heads

    if num_batch_blocks is None:
        num_batch_blocks = _pick_num_batch_blocks(B, S, Dbert, Dmem)
    assert B % num_batch_blocks == 0
    bb = B // num_batch_blocks
    assert num_batch_blocks == 1 or (bb * S) % 8 == 0, (
        "flattened (bb*S) output rows must be sublane (8) aligned")

    mask_key = src_mask.astype(jnp.float32)                             # [B,1,S]
    mask_row = jnp.transpose(src_mask, (0, 2, 1)).astype(jnp.float32)   # [B,S,1]

    # host-precomputed constants (no per-step iota / integer divide in-kernel)
    head_mask = jnp.asarray(
        np.arange(Dbert)[None, :] // d_k == np.arange(num_heads)[:, None],
        jnp.float32)                                                    # (H, D)
    eye = jnp.eye(S, dtype=jnp.float32)                                 # (S, S)

    fuse_qk = (Dbert % 128 == 0)

    args = [att_inputs.astype(jnp.float32), mask_key, mask_row, head_mask, eye]
    in_specs = [
        pl.BlockSpec((bb, S, Dbert), lambda i: (i, 0, 0)),
        pl.BlockSpec((bb, 1, S), lambda i: (i, 0, 0)),
        pl.BlockSpec((bb, S, 1), lambda i: (i, 0, 0)),
        pl.BlockSpec((num_heads, Dbert), lambda i: (0, 0)),
        pl.BlockSpec((S, S), lambda i: (0, 0)),
    ]
    if fuse_qk:
        wqk = jnp.concatenate([params["wq"], params["wk"]], axis=1)
        bqk = jnp.concatenate([params["bq"], params["bk"]], axis=0)
        args += [wqk.astype(jnp.bfloat16),
                 bqk.reshape(1, 2 * Dbert).astype(jnp.float32)]
        in_specs += [pl.BlockSpec((Dbert, 2 * Dbert), lambda i: (0, 0)),
                     pl.BlockSpec((1, 2 * Dbert), lambda i: (0, 0))]
    else:
        args += [params["wq"].astype(jnp.bfloat16),
                 params["bq"].reshape(1, Dbert).astype(jnp.float32),
                 params["wk"].astype(jnp.bfloat16),
                 params["bk"].reshape(1, Dbert).astype(jnp.float32)]
        in_specs += [pl.BlockSpec((Dbert, Dbert), lambda i: (0, 0)),
                     pl.BlockSpec((1, Dbert), lambda i: (0, 0)),
                     pl.BlockSpec((Dbert, Dbert), lambda i: (0, 0)),
                     pl.BlockSpec((1, Dbert), lambda i: (0, 0))]
    for l in range(num_layers):
        w, b = params["gcn"][l]
        args += [w.astype(jnp.bfloat16), b.reshape(1, Dmem).astype(jnp.float32)]
        in_specs += [pl.BlockSpec(w.shape, lambda i: (0, 0)),
                     pl.BlockSpec((1, Dmem), lambda i: (0, 0))]

    # flat 2-D output slabs: one large store per grid step; reshaped outside
    out_specs = [
        pl.BlockSpec((bb * S, Dmem), lambda i: (i, 0)),
        pl.BlockSpec((bb * S, S), lambda i: (i, 0)),
    ]
    out_shape = (jax.ShapeDtypeStruct((B * S, Dmem), out_dtype),
                 jax.ShapeDtypeStruct((B * S, S), adj_dtype))

    # explicit VMEM budget: double-buffered per-step blocks + resident weights
    per_step = (4 * bb * S * (Dbert + 2)
                + np.dtype(out_dtype).itemsize * bb * S * Dmem
                + np.dtype(adj_dtype).itemsize * bb * S * S)
    weight_bytes = sum(int(a.size) * a.dtype.itemsize for a in args[3:])
    vmem_limit = int(min(max(4 * per_step + 2 * weight_bytes + (16 << 20),
                             32 << 20), 100 << 20))

    kernel = _make_fp_nn_kernel(num_heads, num_layers, S, Dbert, Dmem, d_k,
                                bb, fuse_qk)
    f = pl.pallas_call(
        kernel,
        out_shape=out_shape,
        grid_spec=pltpu.PrefetchScalarGridSpec(
            num_scalar_prefetch=0,
            grid=(num_batch_blocks,),
            in_specs=in_specs,
            out_specs=out_specs,
        ),
        compiler_params=pltpu.CompilerParams(
            dimension_semantics=("parallel",),
            vmem_limit_bytes=vmem_limit),
    )
    out_flat, adj_flat = f(*args)
    return out_flat.reshape(B, S, Dmem), adj_flat.reshape(B, S, S)


def fp_nn_reference(att_inputs, src_mask, params, *, num_heads, num_layers):
    """Pure-JAX f32 reference mirroring the torch forward (eval mode)."""
    B, S, Dbert = att_inputs.shape
    d_k = Dbert // num_heads
    q = att_inputs @ params["wq"] + params["bq"]
    k = att_inputs @ params["wk"] + params["bk"]
    qh = q.reshape(B, S, num_heads, d_k).transpose(0, 2, 1, 3)
    kh = k.reshape(B, S, num_heads, d_k).transpose(0, 2, 1, 3)
    sc = jnp.einsum("bhqd,bhkd->bhqk", qh, kh) / math.sqrt(d_k)
    sc = jnp.where(src_mask[:, None, :, :] == 0, -1e9, sc)
    p = jax.nn.softmax(sc, axis=-1)
    adj = p.mean(axis=1)
    eye = jnp.eye(S, dtype=adj.dtype)
    adj = adj * (1.0 - eye) + eye
    adj = jnp.transpose(src_mask, (0, 2, 1)) * adj
    denom = adj.sum(-1, keepdims=True) + 1.0
    out = att_inputs
    for l in range(num_layers):
        w, b = params["gcn"][l]
        ax = adj @ out
        axw = ax @ w + b
        out = jax.nn.relu(axw / denom)
    return out, adj


if __name__ == "__main__":
    # opt: num_layers=2, mem_dim=32, attention_heads=4, bert_dim=32
    B, S = 2, 8
    bert_dim, mem_dim = 32, 32
    num_heads, num_layers = 4, 2

    key = jax.random.PRNGKey(0)
    keys = jax.random.split(key, 10)

    att_inputs = jax.random.normal(keys[0], (B, S, bert_dim), jnp.float32)
    # src_mask: [B, 1, S], zero-out the last 2 tokens of batch 1
    src_mask = jnp.ones((B, 1, S), jnp.float32)
    src_mask = src_mask.at[1, 0, S - 2:].set(0.0)
    sent_em = jax.random.normal(keys[1], (B, bert_dim), jnp.float32)  # unused by forward

    def linear_init(k, fan_in, fan_out):
        bound = 1.0 / math.sqrt(fan_in)
        kw, kb = jax.random.split(k)
        w = jax.random.uniform(kw, (fan_in, fan_out), jnp.float32, -bound, bound)
        b = jax.random.uniform(kb, (fan_out,), jnp.float32, -bound, bound)
        return w, b

    wq, bq = linear_init(keys[2], bert_dim, bert_dim)
    wk, bk = linear_init(keys[3], bert_dim, bert_dim)
    gcn = []
    for l in range(num_layers):
        fan_in = bert_dim if l == 0 else mem_dim
        gcn.append(linear_init(keys[4 + l], fan_in, mem_dim))

    params = {"wq": wq, "bq": bq, "wk": wk, "bk": bk, "gcn": gcn}

    out, adj = fp_nn_forward(
        att_inputs, src_mask, params, num_heads=num_heads, num_layers=num_layers)
    out = jax.block_until_ready(out)
    adj = jax.block_until_ready(adj)

    ref_out, ref_adj = fp_nn_reference(
        att_inputs, src_mask, params, num_heads=num_heads, num_layers=num_layers)

    # attention + GCN matmuls use bf16 MXU operands (f32 accumulate) ->
    # tolerances relaxed vs. a pure-f32 path.
    np.testing.assert_allclose(np.asarray(adj), np.asarray(ref_adj),
                               rtol=2e-2, atol=2e-2)
    np.testing.assert_allclose(np.asarray(out), np.asarray(ref_out),
                               rtol=4e-2, atol=4e-2)
    print("KERNEL_OK")
</pallas_src>

<mosaic_0001>
module attributes {stable_mosaic.version = 11 : i64} {
  func.func @kernel(%arg0: i32, %arg1: memref<1x8x32xf32, #tpu.memory_space<vmem>>, %arg2: memref<1x1x8xf32, #tpu.memory_space<vmem>>, %arg3: memref<1x8x1xf32, #tpu.memory_space<vmem>>, %arg4: memref<4x32xf32, #tpu.memory_space<vmem>>, %arg5: memref<8x8xf32, #tpu.memory_space<vmem>>, %arg6: memref<32x32xbf16, #tpu.memory_space<vmem>>, %arg7: memref<1x32xf32, #tpu.memory_space<vmem>>, %arg8: memref<32x32xbf16, #tpu.memory_space<vmem>>, %arg9: memref<1x32xf32, #tpu.memory_space<vmem>>, %arg10: memref<32x32xbf16, #tpu.memory_space<vmem>>, %arg11: memref<1x32xf32, #tpu.memory_space<vmem>>, %arg12: memref<32x32xbf16, #tpu.memory_space<vmem>>, %arg13: memref<1x32xf32, #tpu.memory_space<vmem>>, %arg14: memref<8x32xf32, #tpu.memory_space<vmem>>, %arg15: memref<8x8xf32, #tpu.memory_space<vmem>>) attributes {dimension_semantics = [#tpu.dimension_semantics<parallel>], iteration_bounds = array<i64: 2>, scalar_prefetch = 0 : i64, scratch_operands = 0 : i64, tpu.core_type = #tpu.core_type<tc>, window_params = [{transform_indices = @transform_0, window_bounds = array<i64: 1, 8, 32>}, {transform_indices = @transform_1, window_bounds = array<i64: 1, 1, 8>}, {transform_indices = @transform_2, window_bounds = array<i64: 1, 8, 1>}, {pipeline_mode = #tpu.pipeline_mode<synchronous>, transform_indices = @transform_3, window_bounds = array<i64: 4, 32>}, {pipeline_mode = #tpu.pipeline_mode<synchronous>, transform_indices = @transform_4, window_bounds = array<i64: 8, 8>}, {pipeline_mode = #tpu.pipeline_mode<synchronous>, transform_indices = @transform_5, window_bounds = array<i64: 32, 32>}, {pipeline_mode = #tpu.pipeline_mode<synchronous>, transform_indices = @transform_6, window_bounds = array<i64: 1, 32>}, {pipeline_mode = #tpu.pipeline_mode<synchronous>, transform_indices = @transform_7, window_bounds = array<i64: 32, 32>}, {pipeline_mode = #tpu.pipeline_mode<synchronous>, transform_indices = @transform_8, window_bounds = array<i64: 1, 32>}, {pipeline_mode = #tpu.pipeline_mode<synchronous>, transform_indices = @transform_9, window_bounds = array<i64: 32, 32>}, {pipeline_mode = #tpu.pipeline_mode<synchronous>, transform_indices = @transform_10, window_bounds = array<i64: 1, 32>}, {pipeline_mode = #tpu.pipeline_mode<synchronous>, transform_indices = @transform_11, window_bounds = array<i64: 32, 32>}, {pipeline_mode = #tpu.pipeline_mode<synchronous>, transform_indices = @transform_12, window_bounds = array<i64: 1, 32>}, {transform_indices = @transform_13, window_bounds = array<i64: 8, 32>}, {transform_indices = @transform_14, window_bounds = array<i64: 8, 8>}]} {
    %c0 = arith.constant 0 : index
    %c0_0 = arith.constant 0 : index
    %c0_1 = arith.constant 0 : index
    %0 = vector.load %arg1[%c0, %c0_0, %c0_1] : memref<1x8x32xf32, #tpu.memory_space<vmem>>, vector<1x8x32xf32>
    %1 = vector.shape_cast %0 : vector<1x8x32xf32> to vector<8x32xf32>
    %2 = arith.truncf %1 : vector<8x32xf32> to vector<8x32xbf16>
    %c0_2 = arith.constant 0 : index
    %c0_3 = arith.constant 0 : index
    %c0_4 = arith.constant 0 : index
    %3 = vector.load %arg2[%c0_2, %c0_3, %c0_4] : memref<1x1x8xf32, #tpu.memory_space<vmem>>, vector<1x1x8xf32>
    %c0_5 = arith.constant 0 : index
    %c0_6 = arith.constant 0 : index
    %c0_7 = arith.constant 0 : index
    %4 = vector.load %arg3[%c0_5, %c0_6, %c0_7] : memref<1x8x1xf32, #tpu.memory_space<vmem>>, vector<1x8x1xf32>
    %c0_8 = arith.constant 0 : index
    %c0_9 = arith.constant 0 : index
    %5 = vector.load %arg4[%c0_8, %c0_9] : memref<4x32xf32, #tpu.memory_space<vmem>>, vector<4x32xf32>
    %c0_10 = arith.constant 0 : index
    %c0_11 = arith.constant 0 : index
    %6 = vector.load %arg5[%c0_10, %c0_11] : memref<8x8xf32, #tpu.memory_space<vmem>>, vector<8x8xf32>
    %c0_12 = arith.constant 0 : index
    %c0_13 = arith.constant 0 : index
    %7 = vector.load %arg6[%c0_12, %c0_13] : memref<32x32xbf16, #tpu.memory_space<vmem>>, vector<32x32xbf16>
    %cst = arith.constant dense<0.000000e+00> : vector<8x32xf32>
    %8 = tpu.matmul %2, %7, %cst {dimension_numbers = #tpu.dot_dimension_numbers<[1], [0], [0], [1], [0, 0, 1, 1], [], []>} : vector<8x32xbf16>, vector<32x32xbf16>, vector<8x32xf32> -> vector<8x32xf32>
    %c0_14 = arith.constant 0 : index
    %c0_15 = arith.constant 0 : index
    %9 = vector.load %arg7[%c0_14, %c0_15] : memref<1x32xf32, #tpu.memory_space<vmem>>, vector<1x32xf32>
    %10 = vector.broadcast %9 : vector<1x32xf32> to vector<8x32xf32>
    %11 = arith.addf %8, %10 : vector<8x32xf32>
    %c0_16 = arith.constant 0 : index
    %c0_17 = arith.constant 0 : index
    %12 = vector.load %arg8[%c0_16, %c0_17] : memref<32x32xbf16, #tpu.memory_space<vmem>>, vector<32x32xbf16>
    %cst_18 = arith.constant dense<0.000000e+00> : vector<8x32xf32>
    %13 = tpu.matmul %2, %12, %cst_18 {dimension_numbers = #tpu.dot_dimension_numbers<[1], [0], [0], [1], [0, 0, 1, 1], [], []>} : vector<8x32xbf16>, vector<32x32xbf16>, vector<8x32xf32> -> vector<8x32xf32>
    %c0_19 = arith.constant 0 : index
    %c0_20 = arith.constant 0 : index
    %14 = vector.load %arg9[%c0_19, %c0_20] : memref<1x32xf32, #tpu.memory_space<vmem>>, vector<1x32xf32>
    %15 = vector.broadcast %14 : vector<1x32xf32> to vector<8x32xf32>
    %16 = arith.addf %13, %15 : vector<8x32xf32>
    %17 = vector.shape_cast %11 : vector<8x32xf32> to vector<1x8x32xf32>
    %18 = vector.shape_cast %16 : vector<8x32xf32> to vector<1x8x32xf32>
    %19 = arith.truncf %18 : vector<1x8x32xf32> to vector<1x8x32xbf16>
    %20 = vector.extract_strided_slice %5 {offsets = [0, 0], sizes = [1, 32], strides = [1, 1]} : vector<4x32xf32> to vector<1x32xf32>
    %21 = vector.shape_cast %20 : vector<1x32xf32> to vector<1x1x32xf32>
    %22 = vector.broadcast %21 : vector<1x1x32xf32> to vector<1x8x32xf32>
    %23 = arith.mulf %17, %22 : vector<1x8x32xf32>
    %24 = vector.extract_strided_slice %5 {offsets = [1, 0], sizes = [1, 32], strides = [1, 1]} : vector<4x32xf32> to vector<1x32xf32>
    %25 = vector.shape_cast %24 : vector<1x32xf32> to vector<1x1x32xf32>
    %26 = vector.broadcast %25 : vector<1x1x32xf32> to vector<1x8x32xf32>
    %27 = arith.mulf %17, %26 : vector<1x8x32xf32>
    %28 = vector.extract_strided_slice %5 {offsets = [2, 0], sizes = [1, 32], strides = [1, 1]} : vector<4x32xf32> to vector<1x32xf32>
    %29 = vector.shape_cast %28 : vector<1x32xf32> to vector<1x1x32xf32>
    %30 = vector.broadcast %29 : vector<1x1x32xf32> to vector<1x8x32xf32>
    %31 = arith.mulf %17, %30 : vector<1x8x32xf32>
    %32 = vector.extract_strided_slice %5 {offsets = [3, 0], sizes = [1, 32], strides = [1, 1]} : vector<4x32xf32> to vector<1x32xf32>
    %33 = vector.shape_cast %32 : vector<1x32xf32> to vector<1x1x32xf32>
    %34 = vector.broadcast %33 : vector<1x1x32xf32> to vector<1x8x32xf32>
    %35 = arith.mulf %17, %34 : vector<1x8x32xf32>
    %36 = tpu.concatenate %23, %27, %31, %35 in 1 : vector<1x8x32xf32>, vector<1x8x32xf32>, vector<1x8x32xf32>, vector<1x8x32xf32> -> vector<1x32x32xf32>
    %37 = arith.truncf %36 : vector<1x32x32xf32> to vector<1x32x32xbf16>
    "tpu.trace_start"() <{level = 10 : i32, message = "bmd,bkd->bmk"}> : () -> ()
    %cst_21 = arith.constant dense<0.000000e+00> : vector<1x32x8xf32>
    %38 = tpu.matmul %37, %19, %cst_21 {dimension_numbers = #tpu.dot_dimension_numbers<[2], [2], [1], [1], [0, 0, 0, 1, 1, 1], [0], [0]>} : vector<1x32x32xbf16>, vector<1x8x32xbf16>, vector<1x32x8xf32> -> vector<1x32x8xf32>
    "tpu.trace_stop"() : () -> ()
    %cst_22 = arith.constant 0.353553385 : f32
    %39 = vector.broadcast %cst_22 : f32 to vector<1x32x8xf32>
    %40 = arith.mulf %38, %39 : vector<1x32x8xf32>
    %cst_23 = arith.constant 0.000000e+00 : f32
    %41 = vector.broadcast %cst_23 : f32 to vector<1x1x8xf32>
    %42 = arith.cmpf oeq, %3, %41 : vector<1x1x8xf32>
    %cst_24 = arith.constant -1.000000e+09 : f32
    %43 = vector.shape_cast %42 : vector<1x1x8xi1> to vector<1x1x8xi1>
    %44 = vector.broadcast %43 : vector<1x1x8xi1> to vector<1x32x8xi1>
    %45 = vector.broadcast %cst_24 : f32 to vector<1x32x8xf32>
    %46 = arith.select %44, %45, %40 : vector<1x32x8xi1>, vector<1x32x8xf32>
    %cst_25 = arith.constant dense<0xFF800000> : vector<1x32xf32>
    %47 = vector.multi_reduction <maximumf>, %46, %cst_25 [2] : vector<1x32x8xf32> to vector<1x32xf32>
    %48 = vector.shape_cast %47 : vector<1x32xf32> to vector<1x32x1xf32>
    %49 = vector.broadcast %48 : vector<1x32x1xf32> to vector<1x32x8xf32>
    %50 = arith.subf %46, %49 : vector<1x32x8xf32>
    %51 = math.exp %50 : vector<1x32x8xf32>
    %cst_26 = arith.constant dense<0.000000e+00> : vector<1x32xf32>
    %52 = vector.multi_reduction <add>, %51, %cst_26 [2] : vector<1x32x8xf32> to vector<1x32xf32>
    %53 = vector.shape_cast %52 : vector<1x32xf32> to vector<1x32x1xf32>
    %cst_27 = arith.constant 4.000000e+00 : f32
    %54 = vector.broadcast %cst_27 : f32 to vector<1x32x1xf32>
    %55 = arith.mulf %53, %54 : vector<1x32x1xf32>
    %56 = tpu.reciprocal %55 : vector<1x32x1xf32> -> vector<1x32x1xf32>
    %57 = vector.broadcast %56 : vector<1x32x1xf32> to vector<1x32x8xf32>
    %58 = arith.mulf %51, %57 : vector<1x32x8xf32>
    %59 = vector.extract_strided_slice %58 {offsets = [0, 0, 0], sizes = [1, 8, 8], strides = [1, 1, 1]} : vector<1x32x8xf32> to vector<1x8x8xf32>
    %60 = vector.extract_strided_slice %58 {offsets = [0, 8, 0], sizes = [1, 8, 8], strides = [1, 1, 1]} : vector<1x32x8xf32> to vector<1x8x8xf32>
    %61 = arith.addf %59, %60 : vector<1x8x8xf32>
    %62 = vector.extract_strided_slice %58 {offsets = [0, 16, 0], sizes = [1, 8, 8], strides = [1, 1, 1]} : vector<1x32x8xf32> to vector<1x8x8xf32>
    %63 = arith.addf %61, %62 : vector<1x8x8xf32>
    %64 = vector.extract_strided_slice %58 {offsets = [0, 24, 0], sizes = [1, 8, 8], strides = [1, 1, 1]} : vector<1x32x8xf32> to vector<1x8x8xf32>
    %65 = arith.addf %63, %64 : vector<1x8x8xf32>
    %cst_28 = arith.constant 1.000000e+00 : f32
    %66 = vector.broadcast %cst_28 : f32 to vector<8x8xf32>
    %67 = arith.subf %66, %6 : vector<8x8xf32>
    %68 = vector.shape_cast %67 : vector<8x8xf32> to vector<1x8x8xf32>
    %69 = arith.mulf %65, %68 : vector<1x8x8xf32>
    %70 = vector.shape_cast %6 : vector<8x8xf32> to vector<1x8x8xf32>
    %71 = arith.addf %69, %70 : vector<1x8x8xf32>
    %72 = vector.broadcast %4 : vector<1x8x1xf32> to vector<1x8x8xf32>
    %73 = arith.mulf %72, %71 : vector<1x8x8xf32>
    %cst_29 = arith.constant dense<0.000000e+00> : vector<1x8xf32>
    %74 = vector.multi_reduction <add>, %73, %cst_29 [2] : vector<1x8x8xf32> to vector<1x8xf32>
    %75 = vector.shape_cast %74 : vector<1x8xf32> to vector<1x8x1xf32>
    %cst_30 = arith.constant 1.000000e+00 : f32
    %76 = vector.broadcast %cst_30 : f32 to vector<1x8x1xf32>
    %77 = arith.addf %75, %76 : vector<1x8x1xf32>
    %78 = tpu.reciprocal %77 {approx = true} : vector<1x8x1xf32> -> vector<1x8x1xf32>
    %79 = vector.shape_cast %78 : vector<1x8x1xf32> to vector<8x1xf32>
    %80 = arith.truncf %73 : vector<1x8x8xf32> to vector<1x8x8xbf16>
    %81 = arith.truncf %0 : vector<1x8x32xf32> to vector<1x8x32xbf16>
    "tpu.trace_start"() <{level = 10 : i32, message = "bqk,bkd->bqd"}> : () -> ()
    %cst_31 = arith.constant dense<0.000000e+00> : vector<1x8x32xf32>
    %82 = tpu.matmul %80, %81, %cst_31 {dimension_numbers = #tpu.dot_dimension_numbers<[2], [1], [1], [2], [0, 0, 0, 1, 1, 2], [0], [0]>} : vector<1x8x8xbf16>, vector<1x8x32xbf16>, vector<1x8x32xf32> -> vector<1x8x32xf32>
    "tpu.trace_stop"() : () -> ()
    %83 = vector.shape_cast %82 : vector<1x8x32xf32> to vector<8x32xf32>
    %84 = arith.truncf %83 : vector<8x32xf32> to vector<8x32xbf16>
    %c0_32 = arith.constant 0 : index
    %c0_33 = arith.constant 0 : index
    %85 = vector.load %arg10[%c0_32, %c0_33] : memref<32x32xbf16, #tpu.memory_space<vmem>>, vector<32x32xbf16>
    %cst_34 = arith.constant dense<0.000000e+00> : vector<8x32xf32>
    %86 = tpu.matmul %84, %85, %cst_34 {dimension_numbers = #tpu.dot_dimension_numbers<[1], [0], [0], [1], [0, 0, 1, 1], [], []>} : vector<8x32xbf16>, vector<32x32xbf16>, vector<8x32xf32> -> vector<8x32xf32>
    %c0_35 = arith.constant 0 : index
    %c0_36 = arith.constant 0 : index
    %87 = vector.load %arg11[%c0_35, %c0_36] : memref<1x32xf32, #tpu.memory_space<vmem>>, vector<1x32xf32>
    %88 = vector.broadcast %87 : vector<1x32xf32> to vector<8x32xf32>
    %89 = arith.addf %86, %88 : vector<8x32xf32>
    %90 = vector.broadcast %79 : vector<8x1xf32> to vector<8x32xf32>
    %91 = arith.mulf %89, %90 : vector<8x32xf32>
    %cst_37 = arith.constant 0.000000e+00 : f32
    %92 = vector.broadcast %cst_37 : f32 to vector<8x32xf32>
    %93 = arith.maximumf %91, %92 : vector<8x32xf32>
    %94 = vector.shape_cast %93 : vector<8x32xf32> to vector<1x8x32xf32>
    %95 = arith.truncf %94 : vector<1x8x32xf32> to vector<1x8x32xbf16>
    "tpu.trace_start"() <{level = 10 : i32, message = "bqk,bkd->bqd"}> : () -> ()
    %cst_38 = arith.constant dense<0.000000e+00> : vector<1x8x32xf32>
    %96 = tpu.matmul %80, %95, %cst_38 {dimension_numbers = #tpu.dot_dimension_numbers<[2], [1], [1], [2], [0, 0, 0, 1, 1, 2], [0], [0]>} : vector<1x8x8xbf16>, vector<1x8x32xbf16>, vector<1x8x32xf32> -> vector<1x8x32xf32>
    "tpu.trace_stop"() : () -> ()
    %97 = vector.shape_cast %96 : vector<1x8x32xf32> to vector<8x32xf32>
    %98 = arith.truncf %97 : vector<8x32xf32> to vector<8x32xbf16>
    %c0_39 = arith.constant 0 : index
    %c0_40 = arith.constant 0 : index
    %99 = vector.load %arg12[%c0_39, %c0_40] : memref<32x32xbf16, #tpu.memory_space<vmem>>, vector<32x32xbf16>
    %cst_41 = arith.constant dense<0.000000e+00> : vector<8x32xf32>
    %100 = tpu.matmul %98, %99, %cst_41 {dimension_numbers = #tpu.dot_dimension_numbers<[1], [0], [0], [1], [0, 0, 1, 1], [], []>} : vector<8x32xbf16>, vector<32x32xbf16>, vector<8x32xf32> -> vector<8x32xf32>
    %c0_42 = arith.constant 0 : index
    %c0_43 = arith.constant 0 : index
    %101 = vector.load %arg13[%c0_42, %c0_43] : memref<1x32xf32, #tpu.memory_space<vmem>>, vector<1x32xf32>
    %102 = vector.broadcast %101 : vector<1x32xf32> to vector<8x32xf32>
    %103 = arith.addf %100, %102 : vector<8x32xf32>
    %104 = vector.broadcast %79 : vector<8x1xf32> to vector<8x32xf32>
    %105 = arith.mulf %103, %104 : vector<8x32xf32>
    %cst_44 = arith.constant 0.000000e+00 : f32
    %106 = vector.broadcast %cst_44 : f32 to vector<8x32xf32>
    %107 = arith.maximumf %105, %106 : vector<8x32xf32>
    %c0_45 = arith.constant 0 : index
    %c0_46 = arith.constant 0 : index
    %108 = vector.load %arg14[%c0_45, %c0_46] : memref<8x32xf32, #tpu.memory_space<vmem>>, vector<8x32xf32>
    tpu.vector_store %arg14[%c0_45, %c0_46], %107 {strides = array<i32>} : memref<8x32xf32, #tpu.memory_space<vmem>>, vector<8x32xf32>,
    %109 = vector.shape_cast %73 : vector<1x8x8xf32> to vector<8x8xf32>
    %c0_47 = arith.constant 0 : index
    %c0_48 = arith.constant 0 : index
    %110 = vector.load %arg15[%c0_47, %c0_48] : memref<8x8xf32, #tpu.memory_space<vmem>>, vector<8x8xf32>
    tpu.vector_store %arg15[%c0_47, %c0_48], %109 {strides = array<i32>} : memref<8x8xf32, #tpu.memory_space<vmem>>, vector<8x8xf32>,
    return
  }
  func.func @transform_0(%arg0: i32) -> (i32, i32, i32) {
    %c0_i32 = arith.constant 0 : i32
    %c0_i32_0 = arith.constant 0 : i32
    %c0_i32_1 = arith.constant 0 : i32
    return %arg0, %c0_i32, %c0_i32_0 : i32, i32, i32
  }
  func.func @transform_1(%arg0: i32) -> (i32, i32, i32) {
    %c0_i32 = arith.constant 0 : i32
    %c0_i32_0 = arith.constant 0 : i32
    %c0_i32_1 = arith.constant 0 : i32
    return %arg0, %c0_i32, %c0_i32_0 : i32, i32, i32
  }
  func.func @transform_2(%arg0: i32) -> (i32, i32, i32) {
    %c0_i32 = arith.constant 0 : i32
    %c0_i32_0 = arith.constant 0 : i32
    %c0_i32_1 = arith.constant 0 : i32
    return %arg0, %c0_i32, %c0_i32_0 : i32, i32, i32
  }
  func.func @transform_3(%arg0: i32) -> (i32, i32) {
    %c0_i32 = arith.constant 0 : i32
    %c0_i32_0 = arith.constant 0 : i32
    %c0_i32_1 = arith.constant 0 : i32
    return %c0_i32, %c0_i32_0 : i32, i32
  }
  func.func @transform_4(%arg0: i32) -> (i32, i32) {
    %c0_i32 = arith.constant 0 : i32
    %c0_i32_0 = arith.constant 0 : i32
    %c0_i32_1 = arith.constant 0 : i32
    return %c0_i32, %c0_i32_0 : i32, i32
  }
  func.func @transform_5(%arg0: i32) -> (i32, i32) {
    %c0_i32 = arith.constant 0 : i32
    %c0_i32_0 = arith.constant 0 : i32
    %c0_i32_1 = arith.constant 0 : i32
    return %c0_i32, %c0_i32_0 : i32, i32
  }
  func.func @transform_6(%arg0: i32) -> (i32, i32) {
    %c0_i32 = arith.constant 0 : i32
    %c0_i32_0 = arith.constant 0 : i32
    %c0_i32_1 = arith.constant 0 : i32
    return %c0_i32, %c0_i32_0 : i32, i32
  }
  func.func @transform_7(%arg0: i32) -> (i32, i32) {
    %c0_i32 = arith.constant 0 : i32
    %c0_i32_0 = arith.constant 0 : i32
    %c0_i32_1 = arith.constant 0 : i32
    return %c0_i32, %c0_i32_0 : i32, i32
  }
  func.func @transform_8(%arg0: i32) -> (i32, i32) {
    %c0_i32 = arith.constant 0 : i32
    %c0_i32_0 = arith.constant 0 : i32
    %c0_i32_1 = arith.constant 0 : i32
    return %c0_i32, %c0_i32_0 : i32, i32
  }
  func.func @transform_9(%arg0: i32) -> (i32, i32) {
    %c0_i32 = arith.constant 0 : i32
    %c0_i32_0 = arith.constant 0 : i32
    %c0_i32_1 = arith.constant 0 : i32
    return %c0_i32, %c0_i32_0 : i32, i32
  }
  func.func @transform_10(%arg0: i32) -> (i32, i32) {
    %c0_i32 = arith.constant 0 : i32
    %c0_i32_0 = arith.constant 0 : i32
    %c0_i32_1 = arith.constant 0 : i32
    return %c0_i32, %c0_i32_0 : i32, i32
  }
  func.func @transform_11(%arg0: i32) -> (i32, i32) {
    %c0_i32 = arith.constant 0 : i32
    %c0_i32_0 = arith.constant 0 : i32
    %c0_i32_1 = arith.constant 0 : i32
    return %c0_i32, %c0_i32_0 : i32, i32
  }
  func.func @transform_12(%arg0: i32) -> (i32, i32) {
    %c0_i32 = arith.constant 0 : i32
    %c0_i32_0 = arith.constant 0 : i32
    %c0_i32_1 = arith.constant 0 : i32
    return %c0_i32, %c0_i32_0 : i32, i32
  }
  func.func @transform_13(%arg0: i32) -> (i32, i32) {
    %c0_i32 = arith.constant 0 : i32
    %c0_i32_0 = arith.constant 0 : i32
    return %arg0, %c0_i32 : i32, i32
  }
  func.func @transform_14(%arg0: i32) -> (i32, i32) {
    %c0_i32 = arith.constant 0 : i32
    %c0_i32_0 = arith.constant 0 : i32
    return %arg0, %c0_i32 : i32, i32
  }
}

</mosaic_0001>

<llo_original>
// kernel: tpu_custom_call.1
$region0: #{tpu_custom_call.1}
  #allocation0 [shape = 'u32[]', space=smem, size = 0x4, offset = 0x4, fixed_abs, tag = 'smem constant byte address 0x4 - core index']
  #allocation1 [shape = 'u32[144,128]{1,0:T(1,128)}', space=vmem, size = 0x12000, scoped, tag = 'internal scratch']
  %s0 = inlined_call_operand.vmem [shape: f32[2,8,32], index: 0, kind: input, shape index: {}]
  %s1 = inlined_call_operand.hbm [shape: f32[2,1,8], index: 1, kind: input, shape index: {}]
  %s2 = inlined_call_operand.vmem [shape: f32[2,8,1], index: 2, kind: input, shape index: {}]
  %s3 = inlined_call_operand.hbm [shape: f32[4,32], index: 3, kind: input, shape index: {}]
  %s4 = inlined_call_operand.hbm [shape: f32[8,8], index: 4, kind: input, shape index: {}]
  %s5 = inlined_call_operand.vmem [shape: bf16[32,32], index: 5, kind: input, shape index: {}]
  %s6 = inlined_call_operand.hbm [shape: f32[1,32], index: 6, kind: input, shape index: {}]
  %s7 = inlined_call_operand.hbm [shape: bf16[32,32], index: 7, kind: input, shape index: {}]
  %s8 = inlined_call_operand.hbm [shape: f32[1,32], index: 8, kind: input, shape index: {}]
  %s9 = inlined_call_operand.vmem [shape: bf16[32,32], index: 9, kind: input, shape index: {}]
  %s10 = inlined_call_operand.vmem [shape: f32[1,32], index: 10, kind: input, shape index: {}]
  %s11 = inlined_call_operand.hbm [shape: bf16[32,32], index: 11, kind: input, shape index: {}]
  %s12 = inlined_call_operand.vmem [shape: f32[1,32], index: 12, kind: input, shape index: {}]
  %s13 = inlined_call_operand.hbm [shape: f32[16,32], index: 13, kind: output, shape index: {0}]
  %s14 = inlined_call_operand.vmem [shape: f32[16,8], index: 14, kind: output, shape index: {1}]
  %15 = xla_tuple %s13, %s14
  %s16 = sld [smem:[#allocation0]]
  $region121: #{tpu_custom_call.1} parent=0
    _
  %s18 = ssub.s32 1, %s16
  %s19 = scalar_select 0, %s18, %s16
  $region1: #{tpu_custom_call.1} parent=0
    #allocation2 [shape = 'u8[1024]{0}', space=vmem, size = 0x400, scoped, tag = 'input window, operand 1']
    #allocation3 [shape = 's32[2]{0}', space=sflag, size = 0x8, scoped, tag = 'scoped memory for tpu_custom_call.1']
    #allocation4 [shape = 's32[2]{0}', space=sflag, size = 0x8, scoped, tag = 'scoped memory for tpu_custom_call.1']
    #allocation5 [shape = 'u8[2048]{0}', space=vmem, size = 0x800, scoped, tag = 'input window, operand 3, single buffered']
    #allocation6 [shape = 's32[1]{0}', space=sflag, size = 0x4, scoped, tag = 'scoped memory for tpu_custom_call.1']
    #allocation7 [shape = 'u8[4096]{0}', space=vmem, size = 0x1000, scoped, tag = 'input window, operand 4, single buffered']
    #allocation8 [shape = 'u8[512]{0}', space=vmem, size = 0x400, scoped, tag = 'input window, operand 6, single buffered']
    #allocation9 [shape = 's32[1]{0}', space=sflag, size = 0x4, scoped, tag = 'scoped memory for tpu_custom_call.1']
    #allocation10 [shape = 'u8[8192]{0}', space=vmem, size = 0x2000, scoped, tag = 'input window, operand 7, single buffered']
    #allocation11 [shape = 'u8[512]{0}', space=vmem, size = 0x400, scoped, tag = 'input window, operand 8, single buffered']
    #allocation12 [shape = 's32[1]{0}', space=sflag, size = 0x4, scoped, tag = 'scoped memory for tpu_custom_call.1']
    #allocation13 [shape = 'u8[8192]{0}', space=vmem, size = 0x2000, scoped, tag = 'input window, operand 11, single buffered']
    #allocation14 [shape = 'u8[8192]{0}', space=vmem, size = 0x2000, scoped, tag = 'output window, operand 0']
    %20 = vsyncpa [#allocation3], 0
    %s21 = scalar_lea.sflag [#allocation3], 1
    %22 = vsyncpa %s21, 0
    %23 = vsyncpa [#allocation6], 0
    %24 = vsyncpa [#allocation9], 0
    %25 = vsyncpa [#allocation12], 0
    %26 = vsyncpa [#allocation4], 0
    %s27 = scalar_lea.sflag [#allocation4], 1
    %28 = vsyncpa %s27, 0
    loop: start=0, step=1, limit=4
    $region2: #{tpu_custom_call.1} parent=1 // loop_pre_header
      _
    $region3: #{tpu_custom_call.1} parent=1 // loop_header
      %s30 = sphi 0, %s34
      %p31 = scmp.ge.s32.totalorder %s30, 4
      %s40 = sphi 0, %s42
      %s43 = sphi 0, %s40
      %s44 = sphi 0, %s43
      %s60 = sphi 0, %s44
      %s66 = sphi 0, %s68
      %s69 = sphi 0, %s66
      %s70 = sphi 0, %s69
      %s86 = sphi 0, %s70
      %s92 = sphi 0, %s94
      %s95 = sphi 0, %s92
      %s96 = sphi 0, %s95
      %s112 = sphi 0, %s96
      %s116 = sphi 0, %s116
      %s118 = sphi 0, %s116
      %s119 = sphi 0, %s118
      %s133 = sphi 0, %s119
      %s137 = sphi 0, %s137
      %s139 = sphi 0, %s137
      %s140 = sphi 0, %s139
      %s154 = sphi 0, %s140
      %s158 = sphi 0, %s158
      %s160 = sphi 0, %s158
      %s161 = sphi 0, %s160
      %s175 = sphi 0, %s161
      %s179 = sphi 0, %s179
      %s181 = sphi 0, %s179
      %s182 = sphi 0, %s181
      %s196 = sphi 0, %s182
      %s200 = sphi 0, %s200
      %s202 = sphi 0, %s200
      %s203 = sphi 0, %s202
      %s217 = sphi 0, %s203
      %s221 = sphi 0, %s221
      %s223 = sphi 0, %s221
      %s224 = sphi 0, %s223
      %s238 = sphi 0, %s224
      %s242 = sphi 0, %s242
      %s244 = sphi 0, %s242
      %s245 = sphi 0, %s244
      %s259 = sphi 0, %s245
      %s263 = sphi 0, %s263
      %s265 = sphi 0, %s263
      %s266 = sphi 0, %s265
      %s280 = sphi 0, %s266
      %s284 = sphi 0, %s284
      %s286 = sphi 0, %s284
      %s287 = sphi 0, %s286
      %s301 = sphi 0, %s287
      %s305 = sphi 0, %s305
      %s307 = sphi 0, %s305
      %s308 = sphi 0, %s307
      %s322 = sphi 0, %s308
      %s328 = sphi 0, %s330
      %s331 = sphi 0, %s328
      %s332 = sphi 0, %s331
      %s348 = sphi 0, %s332
      %s354 = sphi 0, %s356
      %s357 = sphi 0, %s354
      %s358 = sphi 0, %s357
      %s374 = sphi 0, %s358
    $region4: #{tpu_custom_call.1} parent=1 // loop_header_branch
      %33 = sbr.rel (%p31) target = $region8
    $region5: #{tpu_custom_call.1} parent=1 // loop_body
      %s35 = ssub.s32 %s30, 1
      %s36 = ssub.s32 %s30, 2
      %s37 = sadd.s32 %s30, 1
      %s38 = ssub.s32 %s30, %s37
      %p39 = scmp.eq.s32.totalorder %s38, 0
      %s41 = sadd.s32 %s40, 1
      %s42 = scalar_select %p39, %s40, %s41
      %p45 = pneg %p39
      %p46 = scmp.eq.s32.totalorder %s30, 1
      %p47 = por %p45, %p46
      %p48 = scmp.ne.s32.totalorder %s40, %s43
      %p49 = scmp.eq.s32.totalorder %s30, 0
      %p50 = por %p48, %p49
      %p51 = scmp.ne.s32.totalorder %s40, %s43
      %p52 = scmp.eq.s32.totalorder %s35, 1
      %p53 = por %p51, %p52
      %p54 = scmp.ne.s32.totalorder %s43, %s44
      %p55 = scmp.eq.s32.totalorder %s35, 0
      %p56 = por %p54, %p55
      %p57 = scmp.ne.s32.totalorder %s43, %s44
      %p58 = scmp.eq.s32.totalorder %s36, 1
      %p59 = por %p57, %p58
      %p61 = scmp.ne.s32.totalorder %s44, %s60
      %p62 = scmp.eq.s32.totalorder %s36, 0
      %p63 = por %p61, %p62
      %s64 = ssub.s32 %s30, %s37
      %p65 = scmp.eq.s32.totalorder %s64, 0
      %s67 = sadd.s32 %s66, 1
      %s68 = scalar_select %p65, %s66, %s67
      %p71 = pneg %p65
      %p72 = scmp.eq.s32.totalorder %s30, 1
      %p73 = por %p71, %p72
      %p74 = scmp.ne.s32.totalorder %s66, %s69
      %p75 = scmp.eq.s32.totalorder %s30, 0
      %p76 = por %p74, %p75
      %p77 = scmp.ne.s32.totalorder %s66, %s69
      %p78 = scmp.eq.s32.totalorder %s35, 1
      %p79 = por %p77, %p78
      %p80 = scmp.ne.s32.totalorder %s69, %s70
      %p81 = scmp.eq.s32.totalorder %s35, 0
      %p82 = por %p80, %p81
      %p83 = scmp.ne.s32.totalorder %s69, %s70
      %p84 = scmp.eq.s32.totalorder %s36, 1
      %p85 = por %p83, %p84
      %p87 = scmp.ne.s32.totalorder %s70, %s86
      %p88 = scmp.eq.s32.totalorder %s36, 0
      %p89 = por %p87, %p88
      %s90 = ssub.s32 %s30, %s37
      %p91 = scmp.eq.s32.totalorder %s90, 0
      %s93 = sadd.s32 %s92, 1
      %s94 = scalar_select %p91, %s92, %s93
      %p97 = pneg %p91
      %p98 = scmp.eq.s32.totalorder %s30, 1
      %p99 = por %p97, %p98
      %p100 = scmp.ne.s32.totalorder %s92, %s95
      %p101 = scmp.eq.s32.totalorder %s30, 0
      %p102 = por %p100, %p101
      %p103 = scmp.ne.s32.totalorder %s92, %s95
      %p104 = scmp.eq.s32.totalorder %s35, 1
      %p105 = por %p103, %p104
      %p106 = scmp.ne.s32.totalorder %s95, %s96
      %p107 = scmp.eq.s32.totalorder %s35, 0
      %p108 = por %p106, %p107
      %p109 = scmp.ne.s32.totalorder %s95, %s96
      %p110 = scmp.eq.s32.totalorder %s36, 1
      %p111 = por %p109, %p110
      %p113 = scmp.ne.s32.totalorder %s96, %s112
      %p114 = scmp.eq.s32.totalorder %s36, 0
      %p115 = por %p113, %p114
      %s117 = sadd.s32 %s116, 1
      %p120 = scmp.eq.s32.totalorder %s30, 1
      %p121 = scmp.ne.s32.totalorder %s116, %s118
      %p122 = scmp.eq.s32.totalorder %s30, 0
      %p123 = por %p121, %p122
      %p124 = scmp.ne.s32.totalorder %s116, %s118
      %p125 = scmp.eq.s32.totalorder %s35, 1
      %p126 = por %p124, %p125
      %p127 = scmp.ne.s32.totalorder %s118, %s119
      %p128 = scmp.eq.s32.totalorder %s35, 0
      %p129 = por %p127, %p128
      %p130 = scmp.ne.s32.totalorder %s118, %s119
      %p131 = scmp.eq.s32.totalorder %s36, 1
      %p132 = por %p130, %p131
      %p134 = scmp.ne.s32.totalorder %s119, %s133
      %p135 = scmp.eq.s32.totalorder %s36, 0
      %p136 = por %p134, %p135
      %s138 = sadd.s32 %s137, 1
      %p141 = scmp.eq.s32.totalorder %s30, 1
      %p142 = scmp.ne.s32.totalorder %s137, %s139
      %p143 = scmp.eq.s32.totalorder %s30, 0
      %p144 = por %p142, %p143
      %p145 = scmp.ne.s32.totalorder %s137, %s139
      %p146 = scmp.eq.s32.totalorder %s35, 1
      %p147 = por %p145, %p146
      %p148 = scmp.ne.s32.totalorder %s139, %s140
      %p149 = scmp.eq.s32.totalorder %s35, 0
      %p150 = por %p148, %p149
      %p151 = scmp.ne.s32.totalorder %s139, %s140
      %p152 = scmp.eq.s32.totalorder %s36, 1
      %p153 = por %p151, %p152
      %p155 = scmp.ne.s32.totalorder %s140, %s154
      %p156 = scmp.eq.s32.totalorder %s36, 0
      %p157 = por %p155, %p156
      %s159 = sadd.s32 %s158, 1
      %p162 = scmp.eq.s32.totalorder %s30, 1
      %p163 = scmp.ne.s32.totalorder %s158, %s160
      %p164 = scmp.eq.s32.totalorder %s30, 0
      %p165 = por %p163, %p164
      %p166 = scmp.ne.s32.totalorder %s158, %s160
      %p167 = scmp.eq.s32.totalorder %s35, 1
      %p168 = por %p166, %p167
      %p169 = scmp.ne.s32.totalorder %s160, %s161
      %p170 = scmp.eq.s32.totalorder %s35, 0
      %p171 = por %p169, %p170
      %p172 = scmp.ne.s32.totalorder %s160, %s161
      %p173 = scmp.eq.s32.totalorder %s36, 1
      %p174 = por %p172, %p173
      %p176 = scmp.ne.s32.totalorder %s161, %s175
      %p177 = scmp.eq.s32.totalorder %s36, 0
      %p178 = por %p176, %p177
      %s180 = sadd.s32 %s179, 1
      %p183 = scmp.eq.s32.totalorder %s30, 1
      %p184 = scmp.ne.s32.totalorder %s179, %s181
      %p185 = scmp.eq.s32.totalorder %s30, 0
      %p186 = por %p184, %p185
      %p187 = scmp.ne.s32.totalorder %s179, %s181
      %p188 = scmp.eq.s32.totalorder %s35, 1
      %p189 = por %p187, %p188
      %p190 = scmp.ne.s32.totalorder %s181, %s182
      %p191 = scmp.eq.s32.totalorder %s35, 0
      %p192 = por %p190, %p191
      %p193 = scmp.ne.s32.totalorder %s181, %s182
      %p194 = scmp.eq.s32.totalorder %s36, 1
      %p195 = por %p193, %p194
      %p197 = scmp.ne.s32.totalorder %s182, %s196
      %p198 = scmp.eq.s32.totalorder %s36, 0
      %p199 = por %p197, %p198
      %s201 = sadd.s32 %s200, 1
      %p204 = scmp.eq.s32.totalorder %s30, 1
      %p205 = scmp.ne.s32.totalorder %s200, %s202
      %p206 = scmp.eq.s32.totalorder %s30, 0
      %p207 = por %p205, %p206
      %p208 = scmp.ne.s32.totalorder %s200, %s202
      %p209 = scmp.eq.s32.totalorder %s35, 1
      %p210 = por %p208, %p209
      %p211 = scmp.ne.s32.totalorder %s202, %s203
      %p212 = scmp.eq.s32.totalorder %s35, 0
      %p213 = por %p211, %p212
      %p214 = scmp.ne.s32.totalorder %s202, %s203
      %p215 = scmp.eq.s32.totalorder %s36, 1
      %p216 = por %p214, %p215
      %p218 = scmp.ne.s32.totalorder %s203, %s217
      %p219 = scmp.eq.s32.totalorder %s36, 0
      %p220 = por %p218, %p219
      %s222 = sadd.s32 %s221, 1
      %p225 = scmp.eq.s32.totalorder %s30, 1
      %p226 = scmp.ne.s32.totalorder %s221, %s223
      %p227 = scmp.eq.s32.totalorder %s30, 0
      %p228 = por %p226, %p227
      %p229 = scmp.ne.s32.totalorder %s221, %s223
      %p230 = scmp.eq.s32.totalorder %s35, 1
      %p231 = por %p229, %p230
      %p232 = scmp.ne.s32.totalorder %s223, %s224
      %p233 = scmp.eq.s32.totalorder %s35, 0
      %p234 = por %p232, %p233
      %p235 = scmp.ne.s32.totalorder %s223, %s224
      %p236 = scmp.eq.s32.totalorder %s36, 1
      %p237 = por %p235, %p236
      %p239 = scmp.ne.s32.totalorder %s224, %s238
      %p240 = scmp.eq.s32.totalorder %s36, 0
      %p241 = por %p239, %p240
      %s243 = sadd.s32 %s242, 1
      %p246 = scmp.eq.s32.totalorder %s30, 1
      %p247 = scmp.ne.s32.totalorder %s242, %s244
      %p248 = scmp.eq.s32.totalorder %s30, 0
      %p249 = por %p247, %p248
      %p250 = scmp.ne.s32.totalorder %s242, %s244
      %p251 = scmp.eq.s32.totalorder %s35, 1
      %p252 = por %p250, %p251
      %p253 = scmp.ne.s32.totalorder %s244, %s245
      %p254 = scmp.eq.s32.totalorder %s35, 0
      %p255 = por %p253, %p254
      %p256 = scmp.ne.s32.totalorder %s244, %s245
      %p257 = scmp.eq.s32.totalorder %s36, 1
      %p258 = por %p256, %p257
      %p260 = scmp.ne.s32.totalorder %s245, %s259
      %p261 = scmp.eq.s32.totalorder %s36, 0
      %p262 = por %p260, %p261
      %s264 = sadd.s32 %s263, 1
      %p267 = scmp.eq.s32.totalorder %s30, 1
      %p268 = scmp.ne.s32.totalorder %s263, %s265
      %p269 = scmp.eq.s32.totalorder %s30, 0
      %p270 = por %p268, %p269
      %p271 = scmp.ne.s32.totalorder %s263, %s265
      %p272 = scmp.eq.s32.totalorder %s35, 1
      %p273 = por %p271, %p272
      %p274 = scmp.ne.s32.totalorder %s265, %s266
      %p275 = scmp.eq.s32.totalorder %s35, 0
      %p276 = por %p274, %p275
      %p277 = scmp.ne.s32.totalorder %s265, %s266
      %p278 = scmp.eq.s32.totalorder %s36, 1
      %p279 = por %p277, %p278
      %p281 = scmp.ne.s32.totalorder %s266, %s280
      %p282 = scmp.eq.s32.totalorder %s36, 0
      %p283 = por %p281, %p282
      %s285 = sadd.s32 %s284, 1
      %p288 = scmp.eq.s32.totalorder %s30, 1
      %p289 = scmp.ne.s32.totalorder %s284, %s286
      %p290 = scmp.eq.s32.totalorder %s30, 0
      %p291 = por %p289, %p290
      %p292 = scmp.ne.s32.totalorder %s284, %s286
      %p293 = scmp.eq.s32.totalorder %s35, 1
      %p294 = por %p292, %p293
      %p295 = scmp.ne.s32.totalorder %s286, %s287
      %p296 = scmp.eq.s32.totalorder %s35, 0
      %p297 = por %p295, %p296
      %p298 = scmp.ne.s32.totalorder %s286, %s287
      %p299 = scmp.eq.s32.totalorder %s36, 1
      %p300 = por %p298, %p299
      %p302 = scmp.ne.s32.totalorder %s287, %s301
      %p303 = scmp.eq.s32.totalorder %s36, 0
      %p304 = por %p302, %p303
      %s306 = sadd.s32 %s305, 1
      %p309 = scmp.eq.s32.totalorder %s30, 1
      %p310 = scmp.ne.s32.totalorder %s305, %s307
      %p311 = scmp.eq.s32.totalorder %s30, 0
      %p312 = por %p310, %p311
      %p313 = scmp.ne.s32.totalorder %s305, %s307
      %p314 = scmp.eq.s32.totalorder %s35, 1
      %p315 = por %p313, %p314
      %p316 = scmp.ne.s32.totalorder %s307, %s308
      %p317 = scmp.eq.s32.totalorder %s35, 0
      %p318 = por %p316, %p317
      %p319 = scmp.ne.s32.totalorder %s307, %s308
      %p320 = scmp.eq.s32.totalorder %s36, 1
      %p321 = por %p319, %p320
      %p323 = scmp.ne.s32.totalorder %s308, %s322
      %p324 = scmp.eq.s32.totalorder %s36, 0
      %p325 = por %p323, %p324
      %s326 = ssub.s32 %s30, %s37
      %p327 = scmp.eq.s32.totalorder %s326, 0
      %s329 = sadd.s32 %s328, 1
      %s330 = scalar_select %p327, %s328, %s329
      %p333 = pneg %p327
      %p334 = scmp.eq.s32.totalorder %s30, 1
      %p335 = por %p333, %p334
      %p336 = scmp.ne.s32.totalorder %s328, %s331
      %p337 = scmp.eq.s32.totalorder %s30, 0
      %p338 = por %p336, %p337
      %p339 = scmp.ne.s32.totalorder %s328, %s331
      %p340 = scmp.eq.s32.totalorder %s35, 1
      %p341 = por %p339, %p340
      %p342 = scmp.ne.s32.totalorder %s331, %s332
      %p343 = scmp.eq.s32.totalorder %s35, 0
      %p344 = por %p342, %p343
      %p345 = scmp.ne.s32.totalorder %s331, %s332
      %p346 = scmp.eq.s32.totalorder %s36, 1
      %p347 = por %p345, %p346
      %p349 = scmp.ne.s32.totalorder %s332, %s348
      %p350 = scmp.eq.s32.totalorder %s36, 0
      %p351 = por %p349, %p350
      %s352 = ssub.s32 %s30, %s37
      %p353 = scmp.eq.s32.totalorder %s352, 0
      %s355 = sadd.s32 %s354, 1
      %s356 = scalar_select %p353, %s354, %s355
      %p359 = pneg %p353
      %p360 = scmp.eq.s32.totalorder %s30, 1
      %p361 = por %p359, %p360
      %p362 = scmp.ne.s32.totalorder %s354, %s357
      %p363 = scmp.eq.s32.totalorder %s30, 0
      %p364 = por %p362, %p363
      %p365 = scmp.ne.s32.totalorder %s354, %s357
      %p366 = scmp.eq.s32.totalorder %s35, 1
      %p367 = por %p365, %p366
      %p368 = scmp.ne.s32.totalorder %s357, %s358
      %p369 = scmp.eq.s32.totalorder %s35, 0
      %p370 = por %p368, %p369
      %p371 = scmp.ne.s32.totalorder %s357, %s358
      %p372 = scmp.eq.s32.totalorder %s36, 1
      %p373 = por %p371, %p372
      %p375 = scmp.ne.s32.totalorder %s358, %s374
      %p376 = scmp.eq.s32.totalorder %s36, 0
      %p377 = por %p375, %p376
      %p378 = scmp.le.s32.totalorder 1, %s30
      %p379 = scmp.lt.s32.totalorder %s30, 3
      %p380 = pnand %p378, %p379
      %p381 = pneg %p380
      // Predicated region
      $region9: #{tpu_custom_call.1} parent=5 // pred_check
        _
      $region10: #{tpu_custom_call.1} parent=5 // pred_check_branch
        %383 = sbr.rel (%p380) target = $region12
      $region11: #{tpu_custom_call.1} parent=5 // pred_region
        %s384 = ssub.s32 %s30, 1
        // Predicated region
        $region13: #{tpu_custom_call.1} parent=11 // pred_check
          %p385 = pneg %p129
        $region14: #{tpu_custom_call.1} parent=11 // pred_check_branch
          %387 = sbr.rel (%p385) target = $region16
        $region15: #{tpu_custom_call.1} parent=11 // pred_region
          %s389 = ssub.s32 64, 64
          %390 = vsyncadd [#allocation6], %s389
          %s392 = sshll.u32 [#allocation5], 4
          %s393 = int_to_ptr.vmem [resolvable:$true] %s392
          %395 = dma.hbm_to_vmem [thread:$0]  %s3, 64, %s393, [#allocation6]
        $region16: #{tpu_custom_call.1} parent=11 // pred_fallthru
          _
        // Predicated region
        $region17: #{tpu_custom_call.1} parent=11 // pred_check
          %p396 = pneg %p150
        $region18: #{tpu_custom_call.1} parent=11 // pred_check_branch
          %398 = sbr.rel (%p396) target = $region20
        $region19: #{tpu_custom_call.1} parent=11 // pred_region
          %s400 = ssub.s32 128, 128
          %401 = vsyncadd [#allocation6], %s400
          %s403 = sshll.u32 [#allocation7], 4
          %s404 = int_to_ptr.vmem [resolvable:$true] %s403
          %406 = dma.hbm_to_vmem [thread:$0]  %s4, 128, %s404, [#allocation6]
        $region20: #{tpu_custom_call.1} parent=11 // pred_fallthru
          _
        // Predicated region
        $region21: #{tpu_custom_call.1} parent=11 // pred_check
          %p407 = pneg %p171
        $region22: #{tpu_custom_call.1} parent=11 // pred_check_branch
          %409 = sbr.rel (%p407) target = $region24
        $region23: #{tpu_custom_call.1} parent=11 // pred_region
          _
        $region24: #{tpu_custom_call.1} parent=11 // pred_fallthru
          _
        // Predicated region
        $region25: #{tpu_custom_call.1} parent=11 // pred_check
          %p410 = pneg %p192
        $region26: #{tpu_custom_call.1} parent=11 // pred_check_branch
          %412 = sbr.rel (%p410) target = $region28
        $region27: #{tpu_custom_call.1} parent=11 // pred_region
          %s414 = ssub.s32 16, 16
          %415 = vsyncadd [#allocation9], %s414
          %s417 = sshll.u32 [#allocation8], 4
          %s418 = int_to_ptr.vmem [resolvable:$true] %s417
          %420 = dma.hbm_to_vmem [thread:$0]  %s6, 16, %s418, [#allocation9]
        $region28: #{tpu_custom_call.1} parent=11 // pred_fallthru
          _
        // Predicated region
        $region29: #{tpu_custom_call.1} parent=11 // pred_check
          %p421 = pneg %p213
        $region30: #{tpu_custom_call.1} parent=11 // pred_check_branch
          %423 = sbr.rel (%p421) target = $region32
        $region31: #{tpu_custom_call.1} parent=11 // pred_region
          %s425 = ssub.s32 256, 256
          %426 = vsyncadd [#allocation9], %s425
          %s427 = sshll.u32 [#allocation10], 4
          %s428 = int_to_ptr.vmem [resolvable:$true] %s427
          %433 = dma.hbm_to_vmem [thread:$0]  %s7, 256, %s428, [#allocation9], 64, 64, 4
        $region32: #{tpu_custom_call.1} parent=11 // pred_fallthru
          _
        // Predicated region
        $region33: #{tpu_custom_call.1} parent=11 // pred_check
          %p434 = pneg %p234
        $region34: #{tpu_custom_call.1} parent=11 // pred_check_branch
          %436 = sbr.rel (%p434) target = $region36
        $region35: #{tpu_custom_call.1} parent=11 // pred_region
          %s438 = ssub.s32 16, 16
          %439 = vsyncadd [#allocation12], %s438
          %s441 = sshll.u32 [#allocation11], 4
          %s442 = int_to_ptr.vmem [resolvable:$true] %s441
          %444 = dma.hbm_to_vmem [thread:$0]  %s8, 16, %s442, [#allocation12]
        $region36: #{tpu_custom_call.1} parent=11 // pred_fallthru
          _
        // Predicated region
        $region37: #{tpu_custom_call.1} parent=11 // pred_check
          %p445 = pneg %p255
        $region38: #{tpu_custom_call.1} parent=11 // pred_check_branch
          %447 = sbr.rel (%p445) target = $region40
        $region39: #{tpu_custom_call.1} parent=11 // pred_region
          _
        $region40: #{tpu_custom_call.1} parent=11 // pred_fallthru
          _
        // Predicated region
        $region41: #{tpu_custom_call.1} parent=11 // pred_check
          %p448 = pneg %p276
        $region42: #{tpu_custom_call.1} parent=11 // pred_check_branch
          %450 = sbr.rel (%p448) target = $region44
        $region43: #{tpu_custom_call.1} parent=11 // pred_region
          _
        $region44: #{tpu_custom_call.1} parent=11 // pred_fallthru
          _
        // Predicated region
        $region45: #{tpu_custom_call.1} parent=11 // pred_check
          %p451 = pneg %p297
        $region46: #{tpu_custom_call.1} parent=11 // pred_check_branch
          %453 = sbr.rel (%p451) target = $region48
        $region47: #{tpu_custom_call.1} parent=11 // pred_region
          %s455 = ssub.s32 256, 256
          %456 = vsyncadd [#allocation12], %s455
          %s457 = sshll.u32 [#allocation13], 4
          %s458 = int_to_ptr.vmem [resolvable:$true] %s457
          %463 = dma.hbm_to_vmem [thread:$0]  %s11, 256, %s458, [#allocation12], 64, 64, 4
        $region48: #{tpu_custom_call.1} parent=11 // pred_fallthru
          _
        // Predicated region
        $region49: #{tpu_custom_call.1} parent=11 // pred_check
          %p464 = pneg %p318
        $region50: #{tpu_custom_call.1} parent=11 // pred_check_branch
          %466 = sbr.rel (%p464) target = $region52
        $region51: #{tpu_custom_call.1} parent=11 // pred_region
          _
        $region52: #{tpu_custom_call.1} parent=11 // pred_fallthru
          _
      $region12: #{tpu_custom_call.1} parent=5 // pred_fallthru
        _
      %p467 = scmp.lt.s32.totalorder %s30, 2
      // Predicated region
      $region53: #{tpu_custom_call.1} parent=5 // pred_check
        %p468 = pneg %p467
      $region54: #{tpu_custom_call.1} parent=5 // pred_check_branch
        %470 = sbr.rel (%p468) target = $region56
      $region55: #{tpu_custom_call.1} parent=5 // pred_region
        // Predicated region
        $region57: #{tpu_custom_call.1} parent=55 // pred_check
          %p471 = pneg %p50
        $region58: #{tpu_custom_call.1} parent=55 // pred_check_branch
          %473 = sbr.rel (%p471) target = $region60
        $region59: #{tpu_custom_call.1} parent=55 // pred_region
          %p474 = scmp.lt.s32.totalorder %s30, 1
          %s475 = scalar_select %p474, %s30, 1
          %s476 = smul.addr %s475, 8
          %s477 = scalar_lea.vmem %s0, %s476
        $region60: #{tpu_custom_call.1} parent=55 // pred_fallthru
          _
        // Predicated region
        $region61: #{tpu_custom_call.1} parent=55 // pred_check
          %p478 = pneg %p76
        $region62: #{tpu_custom_call.1} parent=55 // pred_check_branch
          %480 = sbr.rel (%p478) target = $region64
        $region63: #{tpu_custom_call.1} parent=55 // pred_region
          %s481 = sand.u32 %s66, 1
          %s482 = scalar_lea.sflag [#allocation3], %s481
          %s483 = sand.u32 %s66, 1
          %s484 = scalar_lea.vmem [#allocation2], %s483
          %s486 = ssub.s32 16, 16
          %487 = vsyncadd %s482, %s486
          %s488 = smul.addr %s30, 16
          %s489 = scalar_lea.hbm %s1, %s488
          %s491 = sshll.u32 %s484, 4
          %s492 = int_to_ptr.vmem [resolvable:$true] %s491
          %494 = dma.hbm_to_vmem [thread:$0]  %s489, 16, %s492, %s482
        $region64: #{tpu_custom_call.1} parent=55 // pred_fallthru
          _
        // Predicated region
        $region65: #{tpu_custom_call.1} parent=55 // pred_check
          %p495 = pneg %p102
        $region66: #{tpu_custom_call.1} parent=55 // pred_check_branch
          %497 = sbr.rel (%p495) target = $region68
        $region67: #{tpu_custom_call.1} parent=55 // pred_region
          %p498 = scmp.lt.s32.totalorder %s30, 1
          %s499 = scalar_select %p498, %s30, 1
          %s500 = smul.addr %s499, 8
          %s501 = scalar_lea.vmem %s2, %s500
        $region68: #{tpu_custom_call.1} parent=55 // pred_fallthru
          _
      $region56: #{tpu_custom_call.1} parent=5 // pred_fallthru
        _
      %p502 = scmp.le.s32.totalorder 1, %s30
      %p503 = scmp.lt.s32.totalorder %s30, 3
      %p504 = pnand %p502, %p503
      %p505 = pneg %p504
      // Predicated region
      $region69: #{tpu_custom_call.1} parent=5 // pred_check
        _
      $region70: #{tpu_custom_call.1} parent=5 // pred_check_branch
        %507 = sbr.rel (%p504) target = $region72
      $region71: #{tpu_custom_call.1} parent=5 // pred_region
        %s508 = ssub.s32 %s30, 1
        %s509 = sand.u32 %s69, 1
        %s510 = scalar_lea.sflag [#allocation3], %s509
        %s511 = sand.u32 %s69, 1
        %s512 = scalar_lea.vmem [#allocation2], %s511
        // Predicated region
        $region73: #{tpu_custom_call.1} parent=71 // pred_check
          %p513 = pneg %p82
        $region74: #{tpu_custom_call.1} parent=71 // pred_check_branch
          %515 = sbr.rel (%p513) target = $region76
        $region75: #{tpu_custom_call.1} parent=71 // pred_region
          %516 = dma.done %s510, 16
        $region76: #{tpu_custom_call.1} parent=71 // pred_fallthru
          _
        // Predicated region
        $region77: #{tpu_custom_call.1} parent=71 // pred_check
          %p517 = pneg %p129
        $region78: #{tpu_custom_call.1} parent=71 // pred_check_branch
          %519 = sbr.rel (%p517) target = $region80
        $region79: #{tpu_custom_call.1} parent=71 // pred_region
          %520 = dma.done [#allocation6], 64
        $region80: #{tpu_custom_call.1} parent=71 // pred_fallthru
          _
        // Predicated region
        $region81: #{tpu_custom_call.1} parent=71 // pred_check
          %p521 = pneg %p150
        $region82: #{tpu_custom_call.1} parent=71 // pred_check_branch
          %523 = sbr.rel (%p521) target = $region84
        $region83: #{tpu_custom_call.1} parent=71 // pred_region
          %524 = dma.done [#allocation6], 128
        $region84: #{tpu_custom_call.1} parent=71 // pred_fallthru
          _
        // Predicated region
        $region85: #{tpu_custom_call.1} parent=71 // pred_check
          %p525 = pneg %p192
        $region86: #{tpu_custom_call.1} parent=71 // pred_check_branch
          %527 = sbr.rel (%p525) target = $region88
        $region87: #{tpu_custom_call.1} parent=71 // pred_region
          %528 = dma.done [#allocation9], 16
        $region88: #{tpu_custom_call.1} parent=71 // pred_fallthru
          _
        // Predicated region
        $region89: #{tpu_custom_call.1} parent=71 // pred_check
          %p529 = pneg %p213
        $region90: #{tpu_custom_call.1} parent=71 // pred_check_branch
          %531 = sbr.rel (%p529) target = $region92
        $region91: #{tpu_custom_call.1} parent=71 // pred_region
          %532 = dma.done [#allocation9], 256
        $region92: #{tpu_custom_call.1} parent=71 // pred_fallthru
          _
        // Predicated region
        $region93: #{tpu_custom_call.1} parent=71 // pred_check
          %p533 = pneg %p234
        $region94: #{tpu_custom_call.1} parent=71 // pred_check_branch
          %535 = sbr.rel (%p533) target = $region96
        $region95: #{tpu_custom_call.1} parent=71 // pred_region
          %536 = dma.done [#allocation12], 16
        $region96: #{tpu_custom_call.1} parent=71 // pred_fallthru
          _
        // Predicated region
        $region97: #{tpu_custom_call.1} parent=71 // pred_check
          %p537 = pneg %p297
        $region98: #{tpu_custom_call.1} parent=71 // pred_check_branch
          %539 = sbr.rel (%p537) target = $region100
        $region99: #{tpu_custom_call.1} parent=71 // pred_region
          %540 = dma.done [#allocation12], 256
        $region100: #{tpu_custom_call.1} parent=71 // pred_fallthru
          _
        %p541 = scmp.lt.s32.totalorder %s35, 1
        %s542 = scalar_select %p541, %s35, 1
        %s543 = smul.addr %s542, 8
        %s544 = scalar_lea.vmem %s0, %s543
        %p545 = pneg %p56
        %p546 = pneg %p53
        %s547 = sand.u32 %s69, 1
        %s548 = scalar_lea.sflag [#allocation3], %s547
        %s549 = sand.u32 %s69, 1
        %s550 = scalar_lea.vmem [#allocation2], %s549
        %p551 = pneg %p82
        %p552 = pneg %p79
        %p553 = scmp.lt.s32.totalorder %s35, 1
        %s554 = scalar_select %p553, %s35, 1
        %s555 = smul.addr %s554, 8
        %s556 = scalar_lea.vmem %s2, %s555
        %p557 = pneg %p108
        %p558 = pneg %p105
        %p559 = pneg %p129
        %p560 = pneg %p126
        %p561 = pneg %p150
        %p562 = pneg %p147
        %p563 = pneg %p171
        %p564 = pneg %p168
        %p565 = pneg %p192
        %p566 = pneg %p189
        %p567 = pneg %p213
        %p568 = pneg %p210
        %p569 = pneg %p234
        %p570 = pneg %p231
        %p571 = pneg %p255
        %p572 = pneg %p252
        %p573 = pneg %p276
        %p574 = pneg %p273
        %p575 = pneg %p297
        %p576 = pneg %p294
        %p577 = pneg %p318
        %p578 = pneg %p315
        %p579 = pneg %p344
        %p580 = pneg %p341
        %s581 = sand.u32 %s331, 1
        %s582 = scalar_lea.sflag [#allocation4], %s581
        %s583 = sand.u32 %s331, 1
        %s584 = smul.addr %s583, 8
        %s585 = scalar_lea.vmem [#allocation14], %s584
        %p586 = pneg %p370
        %p587 = pneg %p367
        %p588 = scmp.lt.s32.totalorder %s35, 1
        %s589 = scalar_select %p588, %s35, 1
        %s590 = smul.addr %s589, 8
        %s591 = scalar_lea.vmem %s14, %s590
        %p592 = scmp.lt.s32.totalorder %s35, 1
        %s593 = scalar_select %p592, %s35, 1
        %s594 = smul.addr %s593, 8
        %s595 = scalar_lea.vmem %s0, %s594
        %p596 = scmp.lt.s32.totalorder %s35, 1
        %s597 = scalar_select %p596, %s35, 1
        %s598 = smul.addr %s597, 8
        %s599 = scalar_lea.vmem %s2, %s598
        %p600 = scmp.lt.s32.totalorder %s35, 1
        %s601 = scalar_select %p600, %s35, 1
        %s602 = smul.addr %s601, 8
        %s603 = scalar_lea.vmem %s14, %s602
        %v605 = vld [vmem:[%s595] sm:$0xff]
        %v606 = vpack.c.bf16 %v605, %v605
        %v607 = vld [vmem:[%s512] sm:$0x1]
        %v608 = vld [vmem:[%s599] sm:$0xff]
        %v609 = vld [vmem:[#allocation5] sm:$0xf]
        %v610 = vld [vmem:[#allocation7] sm:$0xff]
        %v611 = vld [vmem:[%s5] sm:$0xf]
        %v612 = vld [vmem:[%s5 + $0x4] sm:$0xf]
        %v613 = vld [vmem:[%s5 + $0x8] sm:$0xf]
        %v614 = vld [vmem:[%s5 + $0xc] sm:$0xf]
        %v615 = vld [vmem:[#allocation8] sm:$0x1]
        %v617 = vlaneseq
        %v618 = vshrl.u32 %v617, 7
        %v619 = vsub.s32 0, %v618
        %v620 = vrot.slane %v615, %v619
        %v626 = vunpack.c.l.b16 %v611
        %v627 = vunpack.c.l.b16 %v612
        %v628 = vunpack.c.l.b16 %v613
        %v629 = vunpack.c.l.b16 %v614
        %v630 = vpack.c.b16 %v627, %v626
        %v631 = vpack.c.b16 %v629, %v628
        %vm634 = vcmask 261120
        %v636 = vsel %vm634, %v606, 0
        %638 = vmatprep.subr.bf16.mxu0 0
        %639 = vmatpush1.bf16.msra.mxu0 %v630
        %640 = vmatprep.subr.bf16.mxu0 0
        %641 = vmatpush1.bf16.msra.mxu0 %v631
        %642 = vmatprep.subr.bf16.mxu0 0
        %643 = vmatpush1.bf16.msra.mxu0 0
        %644 = vmatprep.subr.bf16.mxu0 0
        %645 = vmatpush1.bf16.msra.mxu0 0
        %646 = vmatprep.subr.bf16.mxu0 0
        %647 = vmatpush1.bf16.msra.mxu0 0
        %648 = vmatprep.subr.bf16.mxu0 0
        %649 = vmatpush1.bf16.msra.mxu0 0
        %650 = vmatprep.subr.bf16.mxu0 0
        %651 = vmatpush1.bf16.msra.mxu0 0
        %652 = vmatprep.subr.bf16.mxu0 0
        %653 = vmatpush1.bf16.msra.mxu0 0
        %654 = vmatprep.subr.bf16.mxu0 0
        %655 = vmatpush1.bf16.msra.mxu0 0
        %656 = vmatprep.subr.bf16.mxu0 0
        %657 = vmatpush1.bf16.msra.mxu0 0
        %658 = vmatprep.subr.bf16.mxu0 0
        %659 = vmatpush1.bf16.msra.mxu0 0
        %660 = vmatprep.subr.bf16.mxu0 0
        %661 = vmatpush1.bf16.msra.mxu0 0
        %662 = vmatprep.subr.bf16.mxu0 0
        %663 = vmatpush1.bf16.msra.mxu0 0
        %664 = vmatprep.subr.bf16.mxu0 0
        %665 = vmatpush1.bf16.msra.mxu0 0
        %666 = vmatprep.subr.bf16.mxu0 0
        %667 = vmatpush1.bf16.msra.mxu0 0
        %668 = vmatprep.subr.bf16.mxu0 0
        %669 = vmatpush1.bf16.msra.mxu0 0
        %670 = vmatprep.mubr.bf16.mxu0 0
        %671 = vmatmul.mubr.bf16.gmra.mrb[0].mxu0 %v636
        %v672 = vpop.f32.mrb[0].mxu0
        %v673 = vadd.f32 %v620, %v672
        %v674 = vpop.f32.mrb[0].mxu0
        %v675 = vpop.f32.mrb[0].mxu0
        %v676 = vpop.f32.mrb[0].mxu0
        %677 = vdwg.mxu0
        %v678 = vld [vmem:[#allocation10] sm:$0xf]
        %v679 = vld [vmem:[#allocation10 + $0x4] sm:$0xf]
        %v680 = vld [vmem:[#allocation10 + $0x8] sm:$0xf]
        %v681 = vld [vmem:[#allocation10 + $0xc] sm:$0xf]
        %v682 = vld [vmem:[#allocation11] sm:$0x1]
        %v684 = vlaneseq
        %v685 = vshrl.u32 %v684, 7
        %v686 = vsub.s32 0, %v685
        %v687 = vrot.slane %v682, %v686
        %v693 = vunpack.c.l.b16 %v678
        %v694 = vunpack.c.l.b16 %v679
        %v695 = vunpack.c.l.b16 %v680
        %v696 = vunpack.c.l.b16 %v681
        %v697 = vpack.c.b16 %v694, %v693
        %v698 = vpack.c.b16 %v696, %v695
        %701 = vmatprep.subr.bf16.mxu0 0
        %702 = vmatpush1.bf16.msra.mxu0 %v697
        %703 = vmatprep.subr.bf16.mxu0 0
        %704 = vmatpush1.bf16.msra.mxu0 %v698
        %705 = vmatprep.subr.bf16.mxu0 0
        %706 = vmatpush1.bf16.msra.mxu0 0
        %707 = vmatprep.subr.bf16.mxu0 0
        %708 = vmatpush1.bf16.msra.mxu0 0
        %709 = vmatprep.subr.bf16.mxu0 0
        %710 = vmatpush1.bf16.msra.mxu0 0
        %711 = vmatprep.subr.bf16.mxu0 0
        %712 = vmatpush1.bf16.msra.mxu0 0
        %713 = vmatprep.subr.bf16.mxu0 0
        %714 = vmatpush1.bf16.msra.mxu0 0
        %715 = vmatprep.subr.bf16.mxu0 0
        %716 = vmatpush1.bf16.msra.mxu0 0
        %717 = vmatprep.subr.bf16.mxu0 0
        %718 = vmatpush1.bf16.msra.mxu0 0
        %719 = vmatprep.subr.bf16.mxu0 0
        %720 = vmatpush1.bf16.msra.mxu0 0
        %721 = vmatprep.subr.bf16.mxu0 0
        %722 = vmatpush1.bf16.msra.mxu0 0
        %723 = vmatprep.subr.bf16.mxu0 0
        %724 = vmatpush1.bf16.msra.mxu0 0
        %725 = vmatprep.subr.bf16.mxu0 0
        %726 = vmatpush1.bf16.msra.mxu0 0
        %727 = vmatprep.subr.bf16.mxu0 0
        %728 = vmatpush1.bf16.msra.mxu0 0
        %729 = vmatprep.subr.bf16.mxu0 0
        %730 = vmatpush1.bf16.msra.mxu0 0
        %731 = vmatprep.subr.bf16.mxu0 0
        %732 = vmatpush1.bf16.msra.mxu0 0
        %733 = vmatprep.mubr.bf16.mxu0 0
        %734 = vmatmul.mubr.bf16.gmra.mrb[0].mxu0 %v636
        %v735 = vpop.f32.mrb[0].mxu0
        %v736 = vadd.f32 %v687, %v735
        %v737 = vpop.f32.mrb[0].mxu0
        %v738 = vpop.f32.mrb[0].mxu0
        %v739 = vpop.f32.mrb[0].mxu0
        %740 = vdwg.mxu0
        %v741 = vpack.c.bf16 %v736, %v736
        %v742 = vlaneseq
        %v743 = vshrl.u32 %v742, 7
        %v744 = vsub.s32 0, %v743
        %v745 = vrot.slane %v609, %v744
        %v746 = vmul.f32 %v673, %v745
        %v747 = vlaneseq
        %v748 = vshrl.u32 %v747, 7
        %v749 = vsub.s32 1, %v748
        %v750 = vrot.slane %v609, %v749
        %v751 = vmul.f32 %v673, %v750
        %v752 = vlaneseq
        %v753 = vshrl.u32 %v752, 7
        %v754 = vsub.s32 2, %v753
        %v755 = vrot.slane %v609, %v754
        %v756 = vmul.f32 %v673, %v755
        %v757 = vlaneseq
        %v758 = vshrl.u32 %v757, 7
        %v759 = vsub.s32 3, %v758
        %v760 = vrot.slane %v609, %v759
        %v761 = vmul.f32 %v673, %v760
        %v762 = vpack.c.bf16 %v751, %v746
        %v763 = vpack.c.bf16 %v761, %v756
        %v765 = vsel %vm634, %v762, 0
        %v768 = vsel %vm634, %v763, 0
        %v771 = vsel %vm634, %v741, 0
        %773 = vmatprep.subr.bf16.mxu0 0
        %774 = vmatpush1.bf16.xpose.msra.mxu0 %v771
        %775 = vmatprep.subr.bf16.mxu0 0
        %776 = vmatpush1.bf16.xpose.msra.mxu0 0
        %777 = vmatprep.subr.bf16.mxu0 0
        %778 = vmatpush1.bf16.xpose.msra.mxu0 0
        %779 = vmatprep.subr.bf16.mxu0 0
        %780 = vmatpush1.bf16.xpose.msra.mxu0 0
        %781 = vmatprep.subr.bf16.mxu0 0
        %782 = vmatpush1.bf16.xpose.msra.mxu0 0
        %783 = vmatprep.subr.bf16.mxu0 0
        %784 = vmatpush1.bf16.xpose.msra.mxu0 0
        %785 = vmatprep.subr.bf16.mxu0 0
        %786 = vmatpush1.bf16.xpose.msra.mxu0 0
        %787 = vmatprep.subr.bf16.mxu0 0
        %788 = vmatpush1.bf16.xpose.msra.mxu0 0
        %789 = vmatprep.subr.bf16.mxu0 0
        %790 = vmatpush1.bf16.xpose.msra.mxu0 0
        %791 = vmatprep.subr.bf16.mxu0 0
        %792 = vmatpush1.bf16.xpose.msra.mxu0 0
        %793 = vmatprep.subr.bf16.mxu0 0
        %794 = vmatpush1.bf16.xpose.msra.mxu0 0
        %795 = vmatprep.subr.bf16.mxu0 0
        %796 = vmatpush1.bf16.xpose.msra.mxu0 0
        %797 = vmatprep.subr.bf16.mxu0 0
        %798 = vmatpush1.bf16.xpose.msra.mxu0 0
        %799 = vmatprep.subr.bf16.mxu0 0
        %800 = vmatpush1.bf16.xpose.msra.mxu0 0
        %801 = vmatprep.subr.bf16.mxu0 0
        %802 = vmatpush1.bf16.xpose.msra.mxu0 0
        %803 = vmatprep.subr.bf16.mxu0 0
        %804 = vmatpush1.bf16.xpose.msra.mxu0 0
        %805 = vmatprep.mubr.bf16.mxu0 0
        %806 = vmatmul.mubr.bf16.gmra.mrb[0].mxu0 %v765
        %v807 = vpop.f32.mrb[0].mxu0
        %v808 = vadd.f32 0.0, %v807
        %v809 = vpop.f32.mrb[0].mxu0
        %v810 = vpop.f32.mrb[0].mxu0
        %v811 = vadd.f32 0.0, %v810
        %v812 = vpop.f32.mrb[0].mxu0
        %813 = vmatprep.mubr.bf16.mxu0 0
        %814 = vmatmul.mubr.bf16.gmra.mrb[0].mxu0 %v768
        %v815 = vpop.f32.mrb[0].mxu0
        %v816 = vadd.f32 0.0, %v815
        %v817 = vpop.f32.mrb[0].mxu0
        %v818 = vpop.f32.mrb[0].mxu0
        %v819 = vadd.f32 0.0, %v818
        %v820 = vpop.f32.mrb[0].mxu0
        %821 = vdwg.mxu0
        %v822 = vmul.f32 %v808, 0.35355338
        %v823 = vmul.f32 %v811, 0.35355338
        %v824 = vmul.f32 %v816, 0.35355338
        %v825 = vmul.f32 %v819, 0.35355338
        %vm826 = vcmp.eq.f32.partialorder %v607, 0.0
        %v827 = vsel %vm826, 1, 0
        %v828 = vlaneseq
        %v829 = vshrl.u32 %v828, 7
        %v830 = vsub.s32 0, %v829
        %v831 = vrot.slane %v827, %v830
        %vm832 = vcmp.eq.s32.totalorder %v831, 1
        %v833 = vsel %vm832, -1e+09, %v822
        %v834 = vsel %vm832, -1e+09, %v823
        %v835 = vsel %vm832, -1e+09, %v824
        %v836 = vsel %vm832, -1e+09, %v825
        %vm837 = vcmask 64512
        %v838 = vsel %vm837, %v833, -inf
        %839 = vmax.xlane.f32.xlu0 %v838
        %v840 = vpop.xlane.xlu0 %839
        %v841 = vsel %vm837, %v834, -inf
        %842 = vmax.xlane.f32.xlu0 %v841
        %v843 = vpop.xlane.xlu0 %842
        %v844 = vsel %vm837, %v835, -inf
        %845 = vmax.xlane.f32.xlu0 %v844
        %v846 = vpop.xlane.xlu0 %845
        %v847 = vsel %vm837, %v836, -inf
        %848 = vmax.xlane.f32.xlu0 %v847
        %v849 = vpop.xlane.xlu0 %848
        %v850 = vsub.f32 %v833, %v840
        %v851 = vsub.f32 %v834, %v843
        %v852 = vsub.f32 %v835, %v846
        %v853 = vsub.f32 %v836, %v849
        %v854 = vmul.f32 %v850, 1.442695
        %v855 = vpow.pop %v854
        %v856 = vmul.f32 %v851, 1.442695
        %v857 = vpow.pop %v856
        %v858 = vmul.f32 %v852, 1.442695
        %v859 = vpow.pop %v858
        %v860 = vmul.f32 %v853, 1.442695
        %v861 = vpow.pop %v860
        %v862 = vsel %vm837, %v855, 0.0
        %863 = vadd.xlane.f32.xlu0 %v862
        %v864 = vpop.xlane.xlu0 %863
        %v865 = vsel %vm837, %v857, 0.0
        %866 = vadd.xlane.f32.xlu0 %v865
        %v867 = vpop.xlane.xlu0 %866
        %v868 = vsel %vm837, %v859, 0.0
        %869 = vadd.xlane.f32.xlu0 %v868
        %v870 = vpop.xlane.xlu0 %869
        %v871 = vsel %vm837, %v861, 0.0
        %872 = vadd.xlane.f32.xlu0 %v871
        %v873 = vpop.xlane.xlu0 %872
        %v874 = vmul.f32 %v864, 4.0
        %v875 = vmul.f32 %v867, 4.0
        %v876 = vmul.f32 %v870, 4.0
        %v877 = vmul.f32 %v873, 4.0
        %v878 = vrcp.pop %v874
        %v879 = vrcp.pop %v875
        %v880 = vrcp.pop %v876
        %v881 = vrcp.pop %v877
        %v882 = vmul.f32 %v855, %v878
        %v883 = vmul.f32 %v857, %v879
        %v884 = vmul.f32 %v859, %v880
        %v885 = vmul.f32 %v861, %v881
        %v886 = vadd.f32 %v882, %v883
        %v887 = vadd.f32 %v886, %v884
        %v888 = vadd.f32 %v887, %v885
        %v889 = vsub.f32 1.0, %v610
        %v890 = vmul.f32 %v888, %v889
        %v891 = vadd.f32 %v890, %v610
        %893 = vset.pattern.permute.xlu0 0
        %894 = vperm.xlu0 %893, %v608
        %v895 = vpop.permute.xlu0 %894
        %v897 = vmul.f32 %v895, %v891
        %v898 = vsel %vm837, %v897, 0.0
        %899 = vadd.xlane.f32.xlu0 %v898
        %v900 = vpop.xlane.xlu0 %899
        %v901 = vadd.f32 %v900, 1.0
        %v902 = vrcp.pop %v901
        %v903 = vpack.c.bf16 %v897, %v897
        %v905 = vsel %vm837, %v903, 0
        %vm907 = vcmask 1043456
        %v908 = vsel %vm907, %v606, 0
        %910 = vmatprep.subr.bf16.mxu0 0
        %911 = vmatpush1.bf16.msra.mxu0 %v908
        %912 = vmatprep.subr.bf16.mxu0 0
        %913 = vmatpush1.bf16.msra.mxu0 0
        %914 = vmatprep.subr.bf16.mxu0 0
        %915 = vmatpush1.bf16.msra.mxu0 0
        %916 = vmatprep.subr.bf16.mxu0 0
        %917 = vmatpush1.bf16.msra.mxu0 0
        %918 = vmatprep.subr.bf16.mxu0 0
        %919 = vmatpush1.bf16.msra.mxu0 0
        %920 = vmatprep.subr.bf16.mxu0 0
        %921 = vmatpush1.bf16.msra.mxu0 0
        %922 = vmatprep.subr.bf16.mxu0 0
        %923 = vmatpush1.bf16.msra.mxu0 0
        %924 = vmatprep.subr.bf16.mxu0 0
        %925 = vmatpush1.bf16.msra.mxu0 0
        %926 = vmatprep.subr.bf16.mxu0 0
        %927 = vmatpush1.bf16.msra.mxu0 0
        %928 = vmatprep.subr.bf16.mxu0 0
        %929 = vmatpush1.bf16.msra.mxu0 0
        %930 = vmatprep.subr.bf16.mxu0 0
        %931 = vmatpush1.bf16.msra.mxu0 0
        %932 = vmatprep.subr.bf16.mxu0 0
        %933 = vmatpush1.bf16.msra.mxu0 0
        %934 = vmatprep.subr.bf16.mxu0 0
        %935 = vmatpush1.bf16.msra.mxu0 0
        %936 = vmatprep.subr.bf16.mxu0 0
        %937 = vmatpush1.bf16.msra.mxu0 0
        %938 = vmatprep.subr.bf16.mxu0 0
        %939 = vmatpush1.bf16.msra.mxu0 0
        %940 = vmatprep.subr.bf16.mxu0 0
        %941 = vmatpush1.bf16.msra.mxu0 0
        %942 = vmatprep.mubr.bf16.mxu0 0
        %943 = vmatmul.mubr.bf16.gmra.mrb[0].mxu0 %v905
        %v944 = vpop.f32.mrb[0].mxu0
        %v945 = vadd.f32 0.0, %v944
        %v946 = vpop.f32.mrb[0].mxu0
        %v947 = vpop.f32.mrb[0].mxu0
        %v948 = vpop.f32.mrb[0].mxu0
        %949 = vdwg.mxu0
        %v950 = vpack.c.bf16 %v945, %v945
        %v951 = vld [vmem:[%s9] sm:$0xf]
        %v952 = vld [vmem:[%s9 + $0x4] sm:$0xf]
        %v953 = vld [vmem:[%s9 + $0x8] sm:$0xf]
        %v954 = vld [vmem:[%s9 + $0xc] sm:$0xf]
        %v955 = vld [vmem:[%s10] sm:$0x1]
        %v957 = vlaneseq
        %v958 = vshrl.u32 %v957, 7
        %v959 = vsub.s32 0, %v958
        %v960 = vrot.slane %v955, %v959
        %v966 = vunpack.c.l.b16 %v951
        %v967 = vunpack.c.l.b16 %v952
        %v968 = vunpack.c.l.b16 %v953
        %v969 = vunpack.c.l.b16 %v954
        %v970 = vpack.c.b16 %v967, %v966
        %v971 = vpack.c.b16 %v969, %v968
        %v975 = vsel %vm634, %v950, 0
        %977 = vmatprep.subr.bf16.mxu0 0
        %978 = vmatpush1.bf16.msra.mxu0 %v970
        %979 = vmatprep.subr.bf16.mxu0 0
        %980 = vmatpush1.bf16.msra.mxu0 %v971
        %981 = vmatprep.subr.bf16.mxu0 0
        %982 = vmatpush1.bf16.msra.mxu0 0
        %983 = vmatprep.subr.bf16.mxu0 0
        %984 = vmatpush1.bf16.msra.mxu0 0
        %985 = vmatprep.subr.bf16.mxu0 0
        %986 = vmatpush1.bf16.msra.mxu0 0
        %987 = vmatprep.subr.bf16.mxu0 0
        %988 = vmatpush1.bf16.msra.mxu0 0
        %989 = vmatprep.subr.bf16.mxu0 0
        %990 = vmatpush1.bf16.msra.mxu0 0
        %991 = vmatprep.subr.bf16.mxu0 0
        %992 = vmatpush1.bf16.msra.mxu0 0
        %993 = vmatprep.subr.bf16.mxu0 0
        %994 = vmatpush1.bf16.msra.mxu0 0
        %995 = vmatprep.subr.bf16.mxu0 0
        %996 = vmatpush1.bf16.msra.mxu0 0
        %997 = vmatprep.subr.bf16.mxu0 0
        %998 = vmatpush1.bf16.msra.mxu0 0
        %999 = vmatprep.subr.bf16.mxu0 0
        %1000 = vmatpush1.bf16.msra.mxu0 0
        %1001 = vmatprep.subr.bf16.mxu0 0
        %1002 = vmatpush1.bf16.msra.mxu0 0
        %1003 = vmatprep.subr.bf16.mxu0 0
        %1004 = vmatpush1.bf16.msra.mxu0 0
        %1005 = vmatprep.subr.bf16.mxu0 0
        %1006 = vmatpush1.bf16.msra.mxu0 0
        %1007 = vmatprep.subr.bf16.mxu0 0
        %1008 = vmatpush1.bf16.msra.mxu0 0
        %1009 = vmatprep.mubr.bf16.mxu0 0
        %1010 = vmatmul.mubr.bf16.gmra.mrb[0].mxu0 %v975
        %v1011 = vpop.f32.mrb[0].mxu0
        %v1012 = vadd.f32 %v960, %v1011
        %v1013 = vpop.f32.mrb[0].mxu0
        %v1014 = vpop.f32.mrb[0].mxu0
        %v1015 = vpop.f32.mrb[0].mxu0
        %1016 = vdwg.mxu0
        %v1017 = vmul.f32 %v1012, %v902
        %v1018 = vmax.f32 %v1017, 0.0
        %v1019 = vpack.c.bf16 %v1018, %v1018
        %v1021 = vsel %vm907, %v1019, 0
        %1023 = vmatprep.subr.bf16.mxu0 0
        %1024 = vmatpush1.bf16.msra.mxu0 %v1021
        %1025 = vmatprep.subr.bf16.mxu0 0
        %1026 = vmatpush1.bf16.msra.mxu0 0
        %1027 = vmatprep.subr.bf16.mxu0 0
        %1028 = vmatpush1.bf16.msra.mxu0 0
        %1029 = vmatprep.subr.bf16.mxu0 0
        %1030 = vmatpush1.bf16.msra.mxu0 0
        %1031 = vmatprep.subr.bf16.mxu0 0
        %1032 = vmatpush1.bf16.msra.mxu0 0
        %1033 = vmatprep.subr.bf16.mxu0 0
        %1034 = vmatpush1.bf16.msra.mxu0 0
        %1035 = vmatprep.subr.bf16.mxu0 0
        %1036 = vmatpush1.bf16.msra.mxu0 0
        %1037 = vmatprep.subr.bf16.mxu0 0
        %1038 = vmatpush1.bf16.msra.mxu0 0
        %1039 = vmatprep.subr.bf16.mxu0 0
        %1040 = vmatpush1.bf16.msra.mxu0 0
        %1041 = vmatprep.subr.bf16.mxu0 0
        %1042 = vmatpush1.bf16.msra.mxu0 0
        %1043 = vmatprep.subr.bf16.mxu0 0
        %1044 = vmatpush1.bf16.msra.mxu0 0
        %1045 = vmatprep.subr.bf16.mxu0 0
        %1046 = vmatpush1.bf16.msra.mxu0 0
        %1047 = vmatprep.subr.bf16.mxu0 0
        %1048 = vmatpush1.bf16.msra.mxu0 0
        %1049 = vmatprep.subr.bf16.mxu0 0
        %1050 = vmatpush1.bf16.msra.mxu0 0
        %1051 = vmatprep.subr.bf16.mxu0 0
        %1052 = vmatpush1.bf16.msra.mxu0 0
        %1053 = vmatprep.subr.bf16.mxu0 0
        %1054 = vmatpush1.bf16.msra.mxu0 0
        %1055 = vmatprep.mubr.bf16.mxu0 0
        %1056 = vmatmul.mubr.bf16.gmra.mrb[0].mxu0 %v905
        %v1057 = vpop.f32.mrb[0].mxu0
        %v1058 = vadd.f32 0.0, %v1057
        %v1059 = vpop.f32.mrb[0].mxu0
        %v1060 = vpop.f32.mrb[0].mxu0
        %v1061 = vpop.f32.mrb[0].mxu0
        %1062 = vdwg.mxu0
        %v1063 = vpack.c.bf16 %v1058, %v1058
        %v1064 = vld [vmem:[#allocation13] sm:$0xf]
        %v1065 = vld [vmem:[#allocation13 + $0x4] sm:$0xf]
        %v1066 = vld [vmem:[#allocation13 + $0x8] sm:$0xf]
        %v1067 = vld [vmem:[#allocation13 + $0xc] sm:$0xf]
        %v1068 = vld [vmem:[%s12] sm:$0x1]
        %v1070 = vlaneseq
        %v1071 = vshrl.u32 %v1070, 7
        %v1072 = vsub.s32 0, %v1071
        %v1073 = vrot.slane %v1068, %v1072
        %v1079 = vunpack.c.l.b16 %v1064
        %v1080 = vunpack.c.l.b16 %v1065
        %v1081 = vunpack.c.l.b16 %v1066
        %v1082 = vunpack.c.l.b16 %v1067
        %v1083 = vpack.c.b16 %v1080, %v1079
        %v1084 = vpack.c.b16 %v1082, %v1081
        %v1088 = vsel %vm634, %v1063, 0
        %1090 = vmatprep.subr.bf16.mxu0 0
        %1091 = vmatpush1.bf16.msra.mxu0 %v1083
        %1092 = vmatprep.subr.bf16.mxu0 0
        %1093 = vmatpush1.bf16.msra.mxu0 %v1084
        %1094 = vmatprep.subr.bf16.mxu0 0
        %1095 = vmatpush1.bf16.msra.mxu0 0
        %1096 = vmatprep.subr.bf16.mxu0 0
        %1097 = vmatpush1.bf16.msra.mxu0 0
        %1098 = vmatprep.subr.bf16.mxu0 0
        %1099 = vmatpush1.bf16.msra.mxu0 0
        %1100 = vmatprep.subr.bf16.mxu0 0
        %1101 = vmatpush1.bf16.msra.mxu0 0
        %1102 = vmatprep.subr.bf16.mxu0 0
        %1103 = vmatpush1.bf16.msra.mxu0 0
        %1104 = vmatprep.subr.bf16.mxu0 0
        %1105 = vmatpush1.bf16.msra.mxu0 0
        %1106 = vmatprep.subr.bf16.mxu0 0
        %1107 = vmatpush1.bf16.msra.mxu0 0
        %1108 = vmatprep.subr.bf16.mxu0 0
        %1109 = vmatpush1.bf16.msra.mxu0 0
        %1110 = vmatprep.subr.bf16.mxu0 0
        %1111 = vmatpush1.bf16.msra.mxu0 0
        %1112 = vmatprep.subr.bf16.mxu0 0
        %1113 = vmatpush1.bf16.msra.mxu0 0
        %1114 = vmatprep.subr.bf16.mxu0 0
        %1115 = vmatpush1.bf16.msra.mxu0 0
        %1116 = vmatprep.subr.bf16.mxu0 0
        %1117 = vmatpush1.bf16.msra.mxu0 0
        %1118 = vmatprep.subr.bf16.mxu0 0
        %1119 = vmatpush1.bf16.msra.mxu0 0
        %1120 = vmatprep.subr.bf16.mxu0 0
        %1121 = vmatpush1.bf16.msra.mxu0 0
        %1122 = vmatprep.mubr.bf16.mxu0 0
        %1123 = vmatmul.mubr.bf16.gmra.mrb[0].mxu0 %v1088
        %v1124 = vpop.f32.mrb[0].mxu0
        %v1125 = vadd.f32 %v1073, %v1124
        %v1126 = vpop.f32.mrb[0].mxu0
        %v1127 = vpop.f32.mrb[0].mxu0
        %v1128 = vpop.f32.mrb[0].mxu0
        %1129 = vdwg.mxu0
        %v1130 = vmul.f32 %v1125, %v902
        %v1131 = vmax.f32 %v1130, 0.0
        %1132 = vst.msk [vmem:[%s585] sm:$0xff] %vm634, %v1131
        %1133 = vst.msk [vmem:[%s603] sm:$0xff] %vm837, %v897
        %s1134 = sand.u32 %s331, 1
        %s1135 = scalar_lea.sflag [#allocation4], %s1134
        %s1136 = sand.u32 %s331, 1
        %s1137 = smul.addr %s1136, 8
        %s1138 = scalar_lea.vmem [#allocation14], %s1137
        %p1139 = scmp.lt.s32.totalorder %s35, 1
        %s1140 = scalar_select %p1139, %s35, 1
        %s1141 = smul.addr %s1140, 8
        %s1142 = scalar_lea.vmem %s14, %s1141
        // Predicated region
        $region101: #{tpu_custom_call.1} parent=71 // pred_check
          %p1143 = pneg %p341
        $region102: #{tpu_custom_call.1} parent=71 // pred_check_branch
          %1145 = sbr.rel (%p1143) target = $region104
        $region103: #{tpu_custom_call.1} parent=71 // pred_region
          %s1147 = ssub.s32 128, 128
          %1148 = vsyncadd %s1135, %s1147
          %s1149 = smul.addr %s35, 128
          %s1150 = scalar_lea.hbm %s13, %s1149
          %s1152 = sshll.u32 %s1138, 4
          %s1153 = int_to_ptr.vmem [resolvable:$true] %s1152
          %1155 = dma.vmem_to_hbm [thread:$0]  %s1153, 128, %s1150, %s1135
        $region104: #{tpu_custom_call.1} parent=71 // pred_fallthru
          _
        // Predicated region
        $region105: #{tpu_custom_call.1} parent=71 // pred_check
          %p1156 = pneg %p367
        $region106: #{tpu_custom_call.1} parent=71 // pred_check_branch
          %1158 = sbr.rel (%p1156) target = $region108
        $region107: #{tpu_custom_call.1} parent=71 // pred_region
          _
        $region108: #{tpu_custom_call.1} parent=71 // pred_fallthru
          _
      $region72: #{tpu_custom_call.1} parent=5 // pred_fallthru
        _
      %p1159 = scmp.le.s32.totalorder 2, %s30
      // Predicated region
      $region109: #{tpu_custom_call.1} parent=5 // pred_check
        %p1160 = pneg %p1159
      $region110: #{tpu_custom_call.1} parent=5 // pred_check_branch
        %1162 = sbr.rel (%p1160) target = $region112
      $region111: #{tpu_custom_call.1} parent=5 // pred_region
        %s1163 = ssub.s32 %s30, 2
        // Predicated region
        $region113: #{tpu_custom_call.1} parent=111 // pred_check
          %p1164 = pneg %p347
        $region114: #{tpu_custom_call.1} parent=111 // pred_check_branch
          %1166 = sbr.rel (%p1164) target = $region116
        $region115: #{tpu_custom_call.1} parent=111 // pred_region
          %s1167 = sand.u32 %s332, 1
          %s1168 = scalar_lea.sflag [#allocation4], %s1167
          %s1169 = sand.u32 %s332, 1
          %s1170 = smul.addr %s1169, 8
          %s1171 = scalar_lea.vmem [#allocation14], %s1170
          %1172 = dma.done %s1168, 128
        $region116: #{tpu_custom_call.1} parent=111 // pred_fallthru
          _
        // Predicated region
        $region117: #{tpu_custom_call.1} parent=111 // pred_check
          %p1173 = pneg %p373
        $region118: #{tpu_custom_call.1} parent=111 // pred_check_branch
          %1175 = sbr.rel (%p1173) target = $region120
        $region119: #{tpu_custom_call.1} parent=111 // pred_region
          %p1176 = scmp.lt.s32.totalorder %s36, 1
          %s1177 = scalar_select %p1176, %s36, 1
          %s1178 = smul.addr %s1177, 8
          %s1179 = scalar_lea.vmem %s14, %s1178
        $region120: #{tpu_custom_call.1} parent=111 // pred_fallthru
          _
      $region112: #{tpu_custom_call.1} parent=5 // pred_fallthru
        _
    $region6: #{tpu_custom_call.1} parent=1 // loop_footer
      %s34 = sadd.s32 1, %s30
    $region7: #{tpu_custom_call.1} parent=1 // loop_footer_branch
      %29 = sbr.rel target = $region3
    $region8: #{tpu_custom_call.1} parent=1 // loop_exit
      _
    %1180 = vsyncpa [#allocation3], 1
    %s1181 = scalar_lea.sflag [#allocation3], 1
    %1182 = vsyncpa %s1181, 1
    %1183 = vsyncpa [#allocation6], 1
    %1184 = vsyncpa [#allocation9], 1
    %1185 = vsyncpa [#allocation12], 1
    %1186 = vsyncpa [#allocation4], 1
    %s1187 = scalar_lea.sflag [#allocation4], 1
    %1188 = vsyncpa %s1187, 1

</llo_original>
